<compile_context>
chip_gen: v7x
topology: tpu7x:2x2x1
jax: 0.10.0
libtpu: 0.0.40
codegen_flags: <defaults>
</compile_context>

<pallas_src>
import math
from functools import partial

import jax
import jax.numpy as jnp
from jax import lax
from jax.experimental import pallas as pl
from jax.experimental.pallas import tpu as pltpu


# ---------------------------------------------------------------------------
# Fused kernel: folded input_transform + encoder LSTM + decoder step + Attention
# ---------------------------------------------------------------------------
def _lstm_gates(gates, c_prev, H):
    """PyTorch LSTM cell non-linearity, gate order (i, f, g, o).

    Two full-vreg transcendental passes (sigmoid + tanh over the whole [*,4H]
    gate vector) instead of four quarter-vreg ones, then cheap lane slices.
    """
    sg = jax.nn.sigmoid(gates)
    tg = jnp.tanh(gates)
    i = sg[:, 0 * H:1 * H]
    f = sg[:, 1 * H:2 * H]
    g = tg[:, 2 * H:3 * H]
    o = sg[:, 3 * H:4 * H]
    c = f * c_prev + i * g
    h = o * jnp.tanh(c)
    return h, c


def fused_pointer_kernel(x_ref, state_ref,
                         wfold_enc_ref, eb_ref, ewhh_bf16_ref,
                         wfold_dec_ref, db_ref, dwhh_bf16_ref,
                         wenc_ref, wrefw_ref, v_ref,
                         dist_ref, h_out_ref, c_out_ref,
                         *, S, H):
    f32 = jnp.float32

    # ---- folded input_transform + input half of encoder LSTM gates ----
    x = x_ref[0]                                                    # [S, I]  (B == 1)
    gates_x = (jnp.dot(x, wfold_enc_ref[...], preferred_element_type=f32)
               + eb_ref[...])                                       # [S, 4H] (bias hoisted)

    # ---- encoder LSTM recurrence, statically unrolled (S is small) ----
    h = jnp.zeros((1, H), f32)
    c = jnp.zeros((1, H), f32)
    enc = jnp.zeros((S, H), f32)                                    # lives in vregs
    row_ids = lax.broadcasted_iota(jnp.int32, (S, 1), 0)            # hoisted out of loop
    for t in range(S):
        # single-pass bf16 MXU matmul on the serial chain, f32 accumulation
        g = gates_x[t:t + 1, :] + jnp.dot(h.astype(jnp.bfloat16),
                                          ewhh_bf16_ref[...],
                                          preferred_element_type=f32)
        h, c = _lstm_gates(g, c, H)
        enc = jnp.where(row_ids == t, h, enc)    # merge row t; no VMEM round-trip

    # ---- decode_single: folded state_transform + one decoder LSTM step ----
    g = (jnp.dot(state_ref[...], wfold_dec_ref[...], preferred_element_type=f32)
         + jnp.dot(h.astype(jnp.bfloat16), dwhh_bf16_ref[...],
                   preferred_element_type=f32)
         + db_ref[...])                                             # [1, 4H]
    h2, c2 = _lstm_gates(g, c, H)
    h_out_ref[...] = h2                                             # written once
    c_out_ref[...] = c2

    # ---- Attention pointer logits ----
    wenc = jnp.dot(enc, wenc_ref[...], preferred_element_type=f32)  # [S, H]
    wq = jnp.dot(h2, wrefw_ref[...], preferred_element_type=f32)    # [1, H]
    att = jnp.tanh(wenc + wq)                                       # [S, H]
    # logits on the MXU: V [1,H] contracted with att [S,H] over H -> [1, S]
    dist = lax.dot_general(v_ref[...], att,
                           dimension_numbers=(((1,), (1,)), ((), ())),
                           preferred_element_type=f32)
    dist_ref[...] = dist                                            # [1, S]


# ---------------------------------------------------------------------------
# One-time host-side parameter preparation (exact folding + bf16 pre-cast)
# ---------------------------------------------------------------------------
def fold_params(p):
    with jax.default_matmul_precision("highest"):
        w_fold_enc = p["W_in"] @ p["enc_wih_t"]        # [I,   4H]
        w_fold_dec = p["W_state"] @ p["dec_wih_t"]     # [Ssz, 4H]
    return {
        "W_fold_enc": w_fold_enc,
        "enc_b": p["enc_b"],
        "enc_whh_bf16": p["enc_whh_t"].astype(jnp.bfloat16),
        "W_fold_dec": w_fold_dec,
        "dec_b": p["dec_b"],
        "dec_whh_bf16": p["dec_whh_t"].astype(jnp.bfloat16),
        "W_enc_t": p["W_enc_t"],
        "W_ref_t": p["W_ref_t"],
        "V": p["V"],
    }


def pointer_networks_forward(x, state, fp):
    B, S, I = x.shape
    assert B == 1, "decode_single path in the module operates on batch 1"
    H = fp["enc_whh_bf16"].shape[0]
    Ssz = state.shape[1]

    flops = 2 * (S * I * 4 * H            # folded input -> gates
                 + S * H * 4 * H          # encoder recurrence
                 + Ssz * 4 * H            # folded state -> gates
                 + H * 4 * H              # decoder h @ W_hh
                 + S * H * H + H * H + S * H)   # attention
    transcendentals = (S + 1) * (2 * 4 * H + H) + S * H
    args = (x, state,
            fp["W_fold_enc"], fp["enc_b"], fp["enc_whh_bf16"],
            fp["W_fold_dec"], fp["dec_b"], fp["dec_whh_bf16"],
            fp["W_enc_t"], fp["W_ref_t"], fp["V"])
    bytes_accessed = (sum(int(a.size) * a.dtype.itemsize for a in args)
                      + 4 * (S + 2 * H))

    kernel = partial(fused_pointer_kernel, S=S, H=H)
    # Whole-array blocks, no grid: the entire working set (< ~100 KB) is
    # resident in VMEM on all of v5e / v6e / v7x.
    return pl.pallas_call(
        kernel,
        out_shape=(jax.ShapeDtypeStruct((B, S), jnp.float32),   # pointer_dist
                   jax.ShapeDtypeStruct((B, H), jnp.float32),   # h
                   jax.ShapeDtypeStruct((B, H), jnp.float32)),  # c
        cost_estimate=pl.CostEstimate(flops=flops,
                                      transcendentals=transcendentals,
                                      bytes_accessed=bytes_accessed),
    )(*args)


# ---------------------------------------------------------------------------
# Pure-JAX references
#   ref_forward_exact:   original (unfolded, full-f32) module semantics
#   ref_forward_matched: same folding + bf16 recurrence as the kernel
# ---------------------------------------------------------------------------
def ref_forward_exact(x, state, p):
    emb = x @ p["W_in"]
    B = x.shape[0]
    H = p["enc_whh_t"].shape[0]

    def step(carry, xt):
        h, c = carry
        g = xt @ p["enc_wih_t"] + h @ p["enc_whh_t"] + p["enc_b"]
        i, f, gg, o = jnp.split(g, 4, axis=-1)
        c = jax.nn.sigmoid(f) * c + jax.nn.sigmoid(i) * jnp.tanh(gg)
        h = jax.nn.sigmoid(o) * jnp.tanh(c)
        return (h, c), h

    (h, c), outs = lax.scan(step, (jnp.zeros((B, H)), jnp.zeros((B, H))),
                            jnp.transpose(emb, (1, 0, 2)))
    enc = jnp.transpose(outs, (1, 0, 2))

    s_emb = state @ p["W_state"]
    g = s_emb @ p["dec_wih_t"] + h @ p["dec_whh_t"] + p["dec_b"]
    i, f, gg, o = jnp.split(g, 4, axis=-1)
    c2 = jax.nn.sigmoid(f) * c + jax.nn.sigmoid(i) * jnp.tanh(gg)
    h2 = jax.nn.sigmoid(o) * jnp.tanh(c2)

    wenc = enc @ p["W_enc_t"]                              # [B, S, H]
    wref = (h2 @ p["W_ref_t"])[:, None, :]                 # [B, 1, H]
    dist = jnp.sum(jnp.tanh(wenc + wref) * p["V"][0], axis=-1)
    return dist, h2, c2


def ref_forward_matched(x, state, fp):
    B = x.shape[0]
    H = fp["enc_whh_bf16"].shape[0]
    gates_x = x @ fp["W_fold_enc"] + fp["enc_b"]           # [B, S, 4H]

    def step(carry, gx):
        h, c = carry
        g = gx + jnp.dot(h.astype(jnp.bfloat16), fp["enc_whh_bf16"],
                         preferred_element_type=jnp.float32)
        i, f, gg, o = jnp.split(g, 4, axis=-1)
        c = jax.nn.sigmoid(f) * c + jax.nn.sigmoid(i) * jnp.tanh(gg)
        h = jax.nn.sigmoid(o) * jnp.tanh(c)
        return (h, c), h

    (h, c), outs = lax.scan(step, (jnp.zeros((B, H)), jnp.zeros((B, H))),
                            jnp.transpose(gates_x, (1, 0, 2)))
    enc = jnp.transpose(outs, (1, 0, 2))

    g = (state @ fp["W_fold_dec"]
         + jnp.dot(h.astype(jnp.bfloat16), fp["dec_whh_bf16"],
                   preferred_element_type=jnp.float32)
         + fp["dec_b"])
    i, f, gg, o = jnp.split(g, 4, axis=-1)
    c2 = jax.nn.sigmoid(f) * c + jax.nn.sigmoid(i) * jnp.tanh(gg)
    h2 = jax.nn.sigmoid(o) * jnp.tanh(c2)

    wenc = enc @ fp["W_enc_t"]
    wref = (h2 @ fp["W_ref_t"])[:, None, :]
    dist = jnp.sum(jnp.tanh(wenc + wref) * fp["V"][0], axis=-1)
    return dist, h2, c2


# ---------------------------------------------------------------------------
# Deterministic parameter init (shapes / uniform ranges from the module)
# ---------------------------------------------------------------------------
def init_params(key, input_size, state_size, embedding_size, hidden_size):
    E, H = embedding_size, hidden_size
    ks = jax.random.split(key, 14)

    def u(k, shape, a):
        return jax.random.uniform(k, shape, jnp.float32, -a, a)

    p = {}
    p["W_in"] = u(ks[0], (input_size, E), 1.0 / math.sqrt(input_size + E))
    p["W_state"] = u(ks[1], (state_size, H), 1.0 / math.sqrt(state_size + H))
    a = 1.0 / math.sqrt(H)
    # LSTM weights stored transposed: [in, 4H]; gate order i,f,g,o (PyTorch)
    p["enc_wih_t"] = u(ks[2], (E, 4 * H), a)
    p["enc_whh_t"] = u(ks[3], (H, 4 * H), a)
    p["enc_b"] = u(ks[4], (1, 4 * H), a) + u(ks[5], (1, 4 * H), a)   # b_ih + b_hh
    p["dec_wih_t"] = u(ks[6], (H, 4 * H), a)   # decoder input dim == embedding == H
    p["dec_whh_t"] = u(ks[7], (H, 4 * H), a)
    p["dec_b"] = u(ks[8], (1, 4 * H), a) + u(ks[9], (1, 4 * H), a)
    # Attention (stored as W^T so the kernel does plain x @ W^T)
    p["W_enc_t"] = u(ks[10], (H, H), a)
    p["W_ref_t"] = u(ks[11], (H, H), a)
    p["V"] = u(ks[12], (1, H), a)
    return p


if __name__ == "__main__":
    key = jax.random.PRNGKey(0)
    B = 1                    # decode_single / get_input operate on batch 1
    num_jobs = 8
    S = num_jobs + 1         # jobs + stop token
    max_job_length = 20
    state_size = max_job_length * 3          # 60 (flattened machine state)
    input_size = max_job_length * 3 + 1      # 61 (job profile + stop flag)
    embedding_size = hidden_size = 32        # decoder consumes state_transform output

    kp, kx, ks = jax.random.split(key, 3)
    params = init_params(kp, input_size, state_size, embedding_size, hidden_size)
    folded = fold_params(params)             # one-time host-side prep
    x = jax.random.uniform(kx, (B, S, input_size), jnp.float32)
    state = jax.random.uniform(ks, (B, state_size), jnp.float32)

    dist, h, c = pointer_networks_forward(x, state, folded)
    jax.block_until_ready((dist, h, c))

    with jax.default_matmul_precision("highest"):
        # same folding / bf16-recurrence precision as the kernel (tight check)
        dist_m, h_m, c_m = ref_forward_matched(x, state, folded)
        # original full-f32 module semantics (loose check, bf16 recurrence drift)
        dist_e, h_e, c_e = ref_forward_exact(x, state, params)

    assert dist.shape == (B, S) and h.shape == (B, hidden_size)
    assert jnp.allclose(dist, dist_m, rtol=1e-3, atol=1e-3)
    assert jnp.allclose(h, h_m, rtol=1e-3, atol=1e-3)
    assert jnp.allclose(c, c_m, rtol=1e-3, atol=1e-3)
    assert jnp.allclose(dist, dist_e, rtol=2e-2, atol=2e-2)
    assert jnp.allclose(h, h_e, rtol=2e-2, atol=2e-2)
    assert jnp.allclose(c, c_e, rtol=2e-2, atol=2e-2)
    print("KERNEL_OK")
</pallas_src>

<mosaic_0001>
module attributes {stable_mosaic.version = 11 : i64} {
  func.func @fused_pointer_kernel(%arg0: memref<1x9x61xf32, #tpu.memory_space<vmem>>, %arg1: memref<1x60xf32, #tpu.memory_space<vmem>>, %arg2: memref<61x128xf32, #tpu.memory_space<vmem>>, %arg3: memref<1x128xf32, #tpu.memory_space<vmem>>, %arg4: memref<32x128xbf16, #tpu.memory_space<vmem>>, %arg5: memref<60x128xf32, #tpu.memory_space<vmem>>, %arg6: memref<1x128xf32, #tpu.memory_space<vmem>>, %arg7: memref<32x128xbf16, #tpu.memory_space<vmem>>, %arg8: memref<32x32xf32, #tpu.memory_space<vmem>>, %arg9: memref<32x32xf32, #tpu.memory_space<vmem>>, %arg10: memref<1x32xf32, #tpu.memory_space<vmem>>, %arg11: memref<1x9xf32, #tpu.memory_space<vmem>>, %arg12: memref<1x32xf32, #tpu.memory_space<vmem>>, %arg13: memref<1x32xf32, #tpu.memory_space<vmem>>) attributes {dimension_semantics = [], scalar_prefetch = 0 : i64, scratch_operands = 0 : i64, tpu.core_type = #tpu.core_type<tc>} {
    %c0 = arith.constant 0 : index
    %c0_0 = arith.constant 0 : index
    %c0_1 = arith.constant 0 : index
    %0 = vector.load %arg0[%c0, %c0_0, %c0_1] : memref<1x9x61xf32, #tpu.memory_space<vmem>>, vector<1x9x61xf32>
    %1 = vector.shape_cast %0 : vector<1x9x61xf32> to vector<9x61xf32>
    %c0_2 = arith.constant 0 : index
    %c0_3 = arith.constant 0 : index
    %2 = vector.load %arg2[%c0_2, %c0_3] : memref<61x128xf32, #tpu.memory_space<vmem>>, vector<61x128xf32>
    %cst = arith.constant dense<0.000000e+00> : vector<9x128xf32>
    %3 = tpu.matmul %1, %2, %cst {dimension_numbers = #tpu.dot_dimension_numbers<[1], [0], [0], [1], [0, 0, 1, 1], [], []>} : vector<9x61xf32>, vector<61x128xf32>, vector<9x128xf32> -> vector<9x128xf32>
    %c0_4 = arith.constant 0 : index
    %c0_5 = arith.constant 0 : index
    %4 = vector.load %arg3[%c0_4, %c0_5] : memref<1x128xf32, #tpu.memory_space<vmem>>, vector<1x128xf32>
    %5 = vector.broadcast %4 : vector<1x128xf32> to vector<9x128xf32>
    %6 = arith.addf %3, %5 : vector<9x128xf32>
    %cst_6 = arith.constant 0.000000e+00 : f32
    %7 = vector.broadcast %cst_6 : f32 to vector<1x32xf32>
    %cst_7 = arith.constant 0.000000e+00 : f32
    %8 = vector.broadcast %cst_7 : f32 to vector<1x32xf32>
    %cst_8 = arith.constant 0.000000e+00 : f32
    %9 = vector.broadcast %cst_8 : f32 to vector<9x32xf32>
    %10 = tpu.iota {dimensions = array<i32: 0>} : vector<9x1xi32>
    %11 = vector.extract_strided_slice %6 {offsets = [0, 0], sizes = [1, 128], strides = [1, 1]} : vector<9x128xf32> to vector<1x128xf32>
    %12 = arith.truncf %7 : vector<1x32xf32> to vector<1x32xbf16>
    %c0_9 = arith.constant 0 : index
    %c0_10 = arith.constant 0 : index
    %13 = vector.load %arg4[%c0_9, %c0_10] : memref<32x128xbf16, #tpu.memory_space<vmem>>, vector<32x128xbf16>
    %cst_11 = arith.constant dense<0.000000e+00> : vector<1x128xf32>
    %14 = tpu.matmul %12, %13, %cst_11 {dimension_numbers = #tpu.dot_dimension_numbers<[1], [0], [0], [1], [0, 0, 1, 1], [], []>} : vector<1x32xbf16>, vector<32x128xbf16>, vector<1x128xf32> -> vector<1x128xf32>
    %15 = arith.addf %11, %14 : vector<1x128xf32>
    %16 = arith.negf %15 : vector<1x128xf32>
    %17 = math.exp %16 : vector<1x128xf32>
    %cst_12 = arith.constant 1.000000e+00 : f32
    %18 = vector.broadcast %cst_12 : f32 to vector<1x128xf32>
    %19 = arith.addf %18, %17 : vector<1x128xf32>
    %20 = arith.divf %18, %19 : vector<1x128xf32>
    %21 = math.tanh %15 : vector<1x128xf32>
    %22 = vector.extract_strided_slice %20 {offsets = [0, 0], sizes = [1, 32], strides = [1, 1]} : vector<1x128xf32> to vector<1x32xf32>
    %23 = vector.extract_strided_slice %20 {offsets = [0, 32], sizes = [1, 32], strides = [1, 1]} : vector<1x128xf32> to vector<1x32xf32>
    %24 = vector.extract_strided_slice %21 {offsets = [0, 64], sizes = [1, 32], strides = [1, 1]} : vector<1x128xf32> to vector<1x32xf32>
    %25 = vector.extract_strided_slice %20 {offsets = [0, 96], sizes = [1, 32], strides = [1, 1]} : vector<1x128xf32> to vector<1x32xf32>
    %26 = arith.mulf %23, %8 : vector<1x32xf32>
    %27 = arith.mulf %22, %24 : vector<1x32xf32>
    %28 = arith.addf %26, %27 : vector<1x32xf32>
    %29 = math.tanh %28 : vector<1x32xf32>
    %30 = arith.mulf %25, %29 : vector<1x32xf32>
    %c0_i32 = arith.constant 0 : i32
    %31 = vector.broadcast %c0_i32 : i32 to vector<9x1xi32>
    %32 = arith.cmpi eq, %10, %31 : vector<9x1xi32>
    %33 = vector.shape_cast %32 : vector<9x1xi1> to vector<9x1xi1>
    %34 = vector.broadcast %33 : vector<9x1xi1> to vector<9x32xi1>
    %35 = vector.shape_cast %30 : vector<1x32xf32> to vector<1x32xf32>
    %36 = vector.broadcast %35 : vector<1x32xf32> to vector<9x32xf32>
    %37 = arith.select %34, %36, %9 : vector<9x32xi1>, vector<9x32xf32>
    %38 = vector.extract_strided_slice %6 {offsets = [1, 0], sizes = [1, 128], strides = [1, 1]} : vector<9x128xf32> to vector<1x128xf32>
    %39 = arith.truncf %30 : vector<1x32xf32> to vector<1x32xbf16>
    %c0_13 = arith.constant 0 : index
    %c0_14 = arith.constant 0 : index
    %40 = vector.load %arg4[%c0_13, %c0_14] : memref<32x128xbf16, #tpu.memory_space<vmem>>, vector<32x128xbf16>
    %cst_15 = arith.constant dense<0.000000e+00> : vector<1x128xf32>
    %41 = tpu.matmul %39, %40, %cst_15 {dimension_numbers = #tpu.dot_dimension_numbers<[1], [0], [0], [1], [0, 0, 1, 1], [], []>} : vector<1x32xbf16>, vector<32x128xbf16>, vector<1x128xf32> -> vector<1x128xf32>
    %42 = arith.addf %38, %41 : vector<1x128xf32>
    %43 = arith.negf %42 : vector<1x128xf32>
    %44 = math.exp %43 : vector<1x128xf32>
    %cst_16 = arith.constant 1.000000e+00 : f32
    %45 = vector.broadcast %cst_16 : f32 to vector<1x128xf32>
    %46 = arith.addf %45, %44 : vector<1x128xf32>
    %47 = arith.divf %45, %46 : vector<1x128xf32>
    %48 = math.tanh %42 : vector<1x128xf32>
    %49 = vector.extract_strided_slice %47 {offsets = [0, 0], sizes = [1, 32], strides = [1, 1]} : vector<1x128xf32> to vector<1x32xf32>
    %50 = vector.extract_strided_slice %47 {offsets = [0, 32], sizes = [1, 32], strides = [1, 1]} : vector<1x128xf32> to vector<1x32xf32>
    %51 = vector.extract_strided_slice %48 {offsets = [0, 64], sizes = [1, 32], strides = [1, 1]} : vector<1x128xf32> to vector<1x32xf32>
    %52 = vector.extract_strided_slice %47 {offsets = [0, 96], sizes = [1, 32], strides = [1, 1]} : vector<1x128xf32> to vector<1x32xf32>
    %53 = arith.mulf %50, %28 : vector<1x32xf32>
    %54 = arith.mulf %49, %51 : vector<1x32xf32>
    %55 = arith.addf %53, %54 : vector<1x32xf32>
    %56 = math.tanh %55 : vector<1x32xf32>
    %57 = arith.mulf %52, %56 : vector<1x32xf32>
    %c1_i32 = arith.constant 1 : i32
    %58 = vector.broadcast %c1_i32 : i32 to vector<9x1xi32>
    %59 = arith.cmpi eq, %10, %58 : vector<9x1xi32>
    %60 = vector.shape_cast %59 : vector<9x1xi1> to vector<9x1xi1>
    %61 = vector.broadcast %60 : vector<9x1xi1> to vector<9x32xi1>
    %62 = vector.shape_cast %57 : vector<1x32xf32> to vector<1x32xf32>
    %63 = vector.broadcast %62 : vector<1x32xf32> to vector<9x32xf32>
    %64 = arith.select %61, %63, %37 : vector<9x32xi1>, vector<9x32xf32>
    %65 = vector.extract_strided_slice %6 {offsets = [2, 0], sizes = [1, 128], strides = [1, 1]} : vector<9x128xf32> to vector<1x128xf32>
    %66 = arith.truncf %57 : vector<1x32xf32> to vector<1x32xbf16>
    %c0_17 = arith.constant 0 : index
    %c0_18 = arith.constant 0 : index
    %67 = vector.load %arg4[%c0_17, %c0_18] : memref<32x128xbf16, #tpu.memory_space<vmem>>, vector<32x128xbf16>
    %cst_19 = arith.constant dense<0.000000e+00> : vector<1x128xf32>
    %68 = tpu.matmul %66, %67, %cst_19 {dimension_numbers = #tpu.dot_dimension_numbers<[1], [0], [0], [1], [0, 0, 1, 1], [], []>} : vector<1x32xbf16>, vector<32x128xbf16>, vector<1x128xf32> -> vector<1x128xf32>
    %69 = arith.addf %65, %68 : vector<1x128xf32>
    %70 = arith.negf %69 : vector<1x128xf32>
    %71 = math.exp %70 : vector<1x128xf32>
    %cst_20 = arith.constant 1.000000e+00 : f32
    %72 = vector.broadcast %cst_20 : f32 to vector<1x128xf32>
    %73 = arith.addf %72, %71 : vector<1x128xf32>
    %74 = arith.divf %72, %73 : vector<1x128xf32>
    %75 = math.tanh %69 : vector<1x128xf32>
    %76 = vector.extract_strided_slice %74 {offsets = [0, 0], sizes = [1, 32], strides = [1, 1]} : vector<1x128xf32> to vector<1x32xf32>
    %77 = vector.extract_strided_slice %74 {offsets = [0, 32], sizes = [1, 32], strides = [1, 1]} : vector<1x128xf32> to vector<1x32xf32>
    %78 = vector.extract_strided_slice %75 {offsets = [0, 64], sizes = [1, 32], strides = [1, 1]} : vector<1x128xf32> to vector<1x32xf32>
    %79 = vector.extract_strided_slice %74 {offsets = [0, 96], sizes = [1, 32], strides = [1, 1]} : vector<1x128xf32> to vector<1x32xf32>
    %80 = arith.mulf %77, %55 : vector<1x32xf32>
    %81 = arith.mulf %76, %78 : vector<1x32xf32>
    %82 = arith.addf %80, %81 : vector<1x32xf32>
    %83 = math.tanh %82 : vector<1x32xf32>
    %84 = arith.mulf %79, %83 : vector<1x32xf32>
    %c2_i32 = arith.constant 2 : i32
    %85 = vector.broadcast %c2_i32 : i32 to vector<9x1xi32>
    %86 = arith.cmpi eq, %10, %85 : vector<9x1xi32>
    %87 = vector.shape_cast %86 : vector<9x1xi1> to vector<9x1xi1>
    %88 = vector.broadcast %87 : vector<9x1xi1> to vector<9x32xi1>
    %89 = vector.shape_cast %84 : vector<1x32xf32> to vector<1x32xf32>
    %90 = vector.broadcast %89 : vector<1x32xf32> to vector<9x32xf32>
    %91 = arith.select %88, %90, %64 : vector<9x32xi1>, vector<9x32xf32>
    %92 = vector.extract_strided_slice %6 {offsets = [3, 0], sizes = [1, 128], strides = [1, 1]} : vector<9x128xf32> to vector<1x128xf32>
    %93 = arith.truncf %84 : vector<1x32xf32> to vector<1x32xbf16>
    %c0_21 = arith.constant 0 : index
    %c0_22 = arith.constant 0 : index
    %94 = vector.load %arg4[%c0_21, %c0_22] : memref<32x128xbf16, #tpu.memory_space<vmem>>, vector<32x128xbf16>
    %cst_23 = arith.constant dense<0.000000e+00> : vector<1x128xf32>
    %95 = tpu.matmul %93, %94, %cst_23 {dimension_numbers = #tpu.dot_dimension_numbers<[1], [0], [0], [1], [0, 0, 1, 1], [], []>} : vector<1x32xbf16>, vector<32x128xbf16>, vector<1x128xf32> -> vector<1x128xf32>
    %96 = arith.addf %92, %95 : vector<1x128xf32>
    %97 = arith.negf %96 : vector<1x128xf32>
    %98 = math.exp %97 : vector<1x128xf32>
    %cst_24 = arith.constant 1.000000e+00 : f32
    %99 = vector.broadcast %cst_24 : f32 to vector<1x128xf32>
    %100 = arith.addf %99, %98 : vector<1x128xf32>
    %101 = arith.divf %99, %100 : vector<1x128xf32>
    %102 = math.tanh %96 : vector<1x128xf32>
    %103 = vector.extract_strided_slice %101 {offsets = [0, 0], sizes = [1, 32], strides = [1, 1]} : vector<1x128xf32> to vector<1x32xf32>
    %104 = vector.extract_strided_slice %101 {offsets = [0, 32], sizes = [1, 32], strides = [1, 1]} : vector<1x128xf32> to vector<1x32xf32>
    %105 = vector.extract_strided_slice %102 {offsets = [0, 64], sizes = [1, 32], strides = [1, 1]} : vector<1x128xf32> to vector<1x32xf32>
    %106 = vector.extract_strided_slice %101 {offsets = [0, 96], sizes = [1, 32], strides = [1, 1]} : vector<1x128xf32> to vector<1x32xf32>
    %107 = arith.mulf %104, %82 : vector<1x32xf32>
    %108 = arith.mulf %103, %105 : vector<1x32xf32>
    %109 = arith.addf %107, %108 : vector<1x32xf32>
    %110 = math.tanh %109 : vector<1x32xf32>
    %111 = arith.mulf %106, %110 : vector<1x32xf32>
    %c3_i32 = arith.constant 3 : i32
    %112 = vector.broadcast %c3_i32 : i32 to vector<9x1xi32>
    %113 = arith.cmpi eq, %10, %112 : vector<9x1xi32>
    %114 = vector.shape_cast %113 : vector<9x1xi1> to vector<9x1xi1>
    %115 = vector.broadcast %114 : vector<9x1xi1> to vector<9x32xi1>
    %116 = vector.shape_cast %111 : vector<1x32xf32> to vector<1x32xf32>
    %117 = vector.broadcast %116 : vector<1x32xf32> to vector<9x32xf32>
    %118 = arith.select %115, %117, %91 : vector<9x32xi1>, vector<9x32xf32>
    %119 = vector.extract_strided_slice %6 {offsets = [4, 0], sizes = [1, 128], strides = [1, 1]} : vector<9x128xf32> to vector<1x128xf32>
    %120 = arith.truncf %111 : vector<1x32xf32> to vector<1x32xbf16>
    %c0_25 = arith.constant 0 : index
    %c0_26 = arith.constant 0 : index
    %121 = vector.load %arg4[%c0_25, %c0_26] : memref<32x128xbf16, #tpu.memory_space<vmem>>, vector<32x128xbf16>
    %cst_27 = arith.constant dense<0.000000e+00> : vector<1x128xf32>
    %122 = tpu.matmul %120, %121, %cst_27 {dimension_numbers = #tpu.dot_dimension_numbers<[1], [0], [0], [1], [0, 0, 1, 1], [], []>} : vector<1x32xbf16>, vector<32x128xbf16>, vector<1x128xf32> -> vector<1x128xf32>
    %123 = arith.addf %119, %122 : vector<1x128xf32>
    %124 = arith.negf %123 : vector<1x128xf32>
    %125 = math.exp %124 : vector<1x128xf32>
    %cst_28 = arith.constant 1.000000e+00 : f32
    %126 = vector.broadcast %cst_28 : f32 to vector<1x128xf32>
    %127 = arith.addf %126, %125 : vector<1x128xf32>
    %128 = arith.divf %126, %127 : vector<1x128xf32>
    %129 = math.tanh %123 : vector<1x128xf32>
    %130 = vector.extract_strided_slice %128 {offsets = [0, 0], sizes = [1, 32], strides = [1, 1]} : vector<1x128xf32> to vector<1x32xf32>
    %131 = vector.extract_strided_slice %128 {offsets = [0, 32], sizes = [1, 32], strides = [1, 1]} : vector<1x128xf32> to vector<1x32xf32>
    %132 = vector.extract_strided_slice %129 {offsets = [0, 64], sizes = [1, 32], strides = [1, 1]} : vector<1x128xf32> to vector<1x32xf32>
    %133 = vector.extract_strided_slice %128 {offsets = [0, 96], sizes = [1, 32], strides = [1, 1]} : vector<1x128xf32> to vector<1x32xf32>
    %134 = arith.mulf %131, %109 : vector<1x32xf32>
    %135 = arith.mulf %130, %132 : vector<1x32xf32>
    %136 = arith.addf %134, %135 : vector<1x32xf32>
    %137 = math.tanh %136 : vector<1x32xf32>
    %138 = arith.mulf %133, %137 : vector<1x32xf32>
    %c4_i32 = arith.constant 4 : i32
    %139 = vector.broadcast %c4_i32 : i32 to vector<9x1xi32>
    %140 = arith.cmpi eq, %10, %139 : vector<9x1xi32>
    %141 = vector.shape_cast %140 : vector<9x1xi1> to vector<9x1xi1>
    %142 = vector.broadcast %141 : vector<9x1xi1> to vector<9x32xi1>
    %143 = vector.shape_cast %138 : vector<1x32xf32> to vector<1x32xf32>
    %144 = vector.broadcast %143 : vector<1x32xf32> to vector<9x32xf32>
    %145 = arith.select %142, %144, %118 : vector<9x32xi1>, vector<9x32xf32>
    %146 = vector.extract_strided_slice %6 {offsets = [5, 0], sizes = [1, 128], strides = [1, 1]} : vector<9x128xf32> to vector<1x128xf32>
    %147 = arith.truncf %138 : vector<1x32xf32> to vector<1x32xbf16>
    %c0_29 = arith.constant 0 : index
    %c0_30 = arith.constant 0 : index
    %148 = vector.load %arg4[%c0_29, %c0_30] : memref<32x128xbf16, #tpu.memory_space<vmem>>, vector<32x128xbf16>
    %cst_31 = arith.constant dense<0.000000e+00> : vector<1x128xf32>
    %149 = tpu.matmul %147, %148, %cst_31 {dimension_numbers = #tpu.dot_dimension_numbers<[1], [0], [0], [1], [0, 0, 1, 1], [], []>} : vector<1x32xbf16>, vector<32x128xbf16>, vector<1x128xf32> -> vector<1x128xf32>
    %150 = arith.addf %146, %149 : vector<1x128xf32>
    %151 = arith.negf %150 : vector<1x128xf32>
    %152 = math.exp %151 : vector<1x128xf32>
    %cst_32 = arith.constant 1.000000e+00 : f32
    %153 = vector.broadcast %cst_32 : f32 to vector<1x128xf32>
    %154 = arith.addf %153, %152 : vector<1x128xf32>
    %155 = arith.divf %153, %154 : vector<1x128xf32>
    %156 = math.tanh %150 : vector<1x128xf32>
    %157 = vector.extract_strided_slice %155 {offsets = [0, 0], sizes = [1, 32], strides = [1, 1]} : vector<1x128xf32> to vector<1x32xf32>
    %158 = vector.extract_strided_slice %155 {offsets = [0, 32], sizes = [1, 32], strides = [1, 1]} : vector<1x128xf32> to vector<1x32xf32>
    %159 = vector.extract_strided_slice %156 {offsets = [0, 64], sizes = [1, 32], strides = [1, 1]} : vector<1x128xf32> to vector<1x32xf32>
    %160 = vector.extract_strided_slice %155 {offsets = [0, 96], sizes = [1, 32], strides = [1, 1]} : vector<1x128xf32> to vector<1x32xf32>
    %161 = arith.mulf %158, %136 : vector<1x32xf32>
    %162 = arith.mulf %157, %159 : vector<1x32xf32>
    %163 = arith.addf %161, %162 : vector<1x32xf32>
    %164 = math.tanh %163 : vector<1x32xf32>
    %165 = arith.mulf %160, %164 : vector<1x32xf32>
    %c5_i32 = arith.constant 5 : i32
    %166 = vector.broadcast %c5_i32 : i32 to vector<9x1xi32>
    %167 = arith.cmpi eq, %10, %166 : vector<9x1xi32>
    %168 = vector.shape_cast %167 : vector<9x1xi1> to vector<9x1xi1>
    %169 = vector.broadcast %168 : vector<9x1xi1> to vector<9x32xi1>
    %170 = vector.shape_cast %165 : vector<1x32xf32> to vector<1x32xf32>
    %171 = vector.broadcast %170 : vector<1x32xf32> to vector<9x32xf32>
    %172 = arith.select %169, %171, %145 : vector<9x32xi1>, vector<9x32xf32>
    %173 = vector.extract_strided_slice %6 {offsets = [6, 0], sizes = [1, 128], strides = [1, 1]} : vector<9x128xf32> to vector<1x128xf32>
    %174 = arith.truncf %165 : vector<1x32xf32> to vector<1x32xbf16>
    %c0_33 = arith.constant 0 : index
    %c0_34 = arith.constant 0 : index
    %175 = vector.load %arg4[%c0_33, %c0_34] : memref<32x128xbf16, #tpu.memory_space<vmem>>, vector<32x128xbf16>
    %cst_35 = arith.constant dense<0.000000e+00> : vector<1x128xf32>
    %176 = tpu.matmul %174, %175, %cst_35 {dimension_numbers = #tpu.dot_dimension_numbers<[1], [0], [0], [1], [0, 0, 1, 1], [], []>} : vector<1x32xbf16>, vector<32x128xbf16>, vector<1x128xf32> -> vector<1x128xf32>
    %177 = arith.addf %173, %176 : vector<1x128xf32>
    %178 = arith.negf %177 : vector<1x128xf32>
    %179 = math.exp %178 : vector<1x128xf32>
    %cst_36 = arith.constant 1.000000e+00 : f32
    %180 = vector.broadcast %cst_36 : f32 to vector<1x128xf32>
    %181 = arith.addf %180, %179 : vector<1x128xf32>
    %182 = arith.divf %180, %181 : vector<1x128xf32>
    %183 = math.tanh %177 : vector<1x128xf32>
    %184 = vector.extract_strided_slice %182 {offsets = [0, 0], sizes = [1, 32], strides = [1, 1]} : vector<1x128xf32> to vector<1x32xf32>
    %185 = vector.extract_strided_slice %182 {offsets = [0, 32], sizes = [1, 32], strides = [1, 1]} : vector<1x128xf32> to vector<1x32xf32>
    %186 = vector.extract_strided_slice %183 {offsets = [0, 64], sizes = [1, 32], strides = [1, 1]} : vector<1x128xf32> to vector<1x32xf32>
    %187 = vector.extract_strided_slice %182 {offsets = [0, 96], sizes = [1, 32], strides = [1, 1]} : vector<1x128xf32> to vector<1x32xf32>
    %188 = arith.mulf %185, %163 : vector<1x32xf32>
    %189 = arith.mulf %184, %186 : vector<1x32xf32>
    %190 = arith.addf %188, %189 : vector<1x32xf32>
    %191 = math.tanh %190 : vector<1x32xf32>
    %192 = arith.mulf %187, %191 : vector<1x32xf32>
    %c6_i32 = arith.constant 6 : i32
    %193 = vector.broadcast %c6_i32 : i32 to vector<9x1xi32>
    %194 = arith.cmpi eq, %10, %193 : vector<9x1xi32>
    %195 = vector.shape_cast %194 : vector<9x1xi1> to vector<9x1xi1>
    %196 = vector.broadcast %195 : vector<9x1xi1> to vector<9x32xi1>
    %197 = vector.shape_cast %192 : vector<1x32xf32> to vector<1x32xf32>
    %198 = vector.broadcast %197 : vector<1x32xf32> to vector<9x32xf32>
    %199 = arith.select %196, %198, %172 : vector<9x32xi1>, vector<9x32xf32>
    %200 = vector.extract_strided_slice %6 {offsets = [7, 0], sizes = [1, 128], strides = [1, 1]} : vector<9x128xf32> to vector<1x128xf32>
    %201 = arith.truncf %192 : vector<1x32xf32> to vector<1x32xbf16>
    %c0_37 = arith.constant 0 : index
    %c0_38 = arith.constant 0 : index
    %202 = vector.load %arg4[%c0_37, %c0_38] : memref<32x128xbf16, #tpu.memory_space<vmem>>, vector<32x128xbf16>
    %cst_39 = arith.constant dense<0.000000e+00> : vector<1x128xf32>
    %203 = tpu.matmul %201, %202, %cst_39 {dimension_numbers = #tpu.dot_dimension_numbers<[1], [0], [0], [1], [0, 0, 1, 1], [], []>} : vector<1x32xbf16>, vector<32x128xbf16>, vector<1x128xf32> -> vector<1x128xf32>
    %204 = arith.addf %200, %203 : vector<1x128xf32>
    %205 = arith.negf %204 : vector<1x128xf32>
    %206 = math.exp %205 : vector<1x128xf32>
    %cst_40 = arith.constant 1.000000e+00 : f32
    %207 = vector.broadcast %cst_40 : f32 to vector<1x128xf32>
    %208 = arith.addf %207, %206 : vector<1x128xf32>
    %209 = arith.divf %207, %208 : vector<1x128xf32>
    %210 = math.tanh %204 : vector<1x128xf32>
    %211 = vector.extract_strided_slice %209 {offsets = [0, 0], sizes = [1, 32], strides = [1, 1]} : vector<1x128xf32> to vector<1x32xf32>
    %212 = vector.extract_strided_slice %209 {offsets = [0, 32], sizes = [1, 32], strides = [1, 1]} : vector<1x128xf32> to vector<1x32xf32>
    %213 = vector.extract_strided_slice %210 {offsets = [0, 64], sizes = [1, 32], strides = [1, 1]} : vector<1x128xf32> to vector<1x32xf32>
    %214 = vector.extract_strided_slice %209 {offsets = [0, 96], sizes = [1, 32], strides = [1, 1]} : vector<1x128xf32> to vector<1x32xf32>
    %215 = arith.mulf %212, %190 : vector<1x32xf32>
    %216 = arith.mulf %211, %213 : vector<1x32xf32>
    %217 = arith.addf %215, %216 : vector<1x32xf32>
    %218 = math.tanh %217 : vector<1x32xf32>
    %219 = arith.mulf %214, %218 : vector<1x32xf32>
    %c7_i32 = arith.constant 7 : i32
    %220 = vector.broadcast %c7_i32 : i32 to vector<9x1xi32>
    %221 = arith.cmpi eq, %10, %220 : vector<9x1xi32>
    %222 = vector.shape_cast %221 : vector<9x1xi1> to vector<9x1xi1>
    %223 = vector.broadcast %222 : vector<9x1xi1> to vector<9x32xi1>
    %224 = vector.shape_cast %219 : vector<1x32xf32> to vector<1x32xf32>
    %225 = vector.broadcast %224 : vector<1x32xf32> to vector<9x32xf32>
    %226 = arith.select %223, %225, %199 : vector<9x32xi1>, vector<9x32xf32>
    %227 = vector.extract_strided_slice %6 {offsets = [8, 0], sizes = [1, 128], strides = [1, 1]} : vector<9x128xf32> to vector<1x128xf32>
    %228 = arith.truncf %219 : vector<1x32xf32> to vector<1x32xbf16>
    %c0_41 = arith.constant 0 : index
    %c0_42 = arith.constant 0 : index
    %229 = vector.load %arg4[%c0_41, %c0_42] : memref<32x128xbf16, #tpu.memory_space<vmem>>, vector<32x128xbf16>
    %cst_43 = arith.constant dense<0.000000e+00> : vector<1x128xf32>
    %230 = tpu.matmul %228, %229, %cst_43 {dimension_numbers = #tpu.dot_dimension_numbers<[1], [0], [0], [1], [0, 0, 1, 1], [], []>} : vector<1x32xbf16>, vector<32x128xbf16>, vector<1x128xf32> -> vector<1x128xf32>
    %231 = arith.addf %227, %230 : vector<1x128xf32>
    %232 = arith.negf %231 : vector<1x128xf32>
    %233 = math.exp %232 : vector<1x128xf32>
    %cst_44 = arith.constant 1.000000e+00 : f32
    %234 = vector.broadcast %cst_44 : f32 to vector<1x128xf32>
    %235 = arith.addf %234, %233 : vector<1x128xf32>
    %236 = arith.divf %234, %235 : vector<1x128xf32>
    %237 = math.tanh %231 : vector<1x128xf32>
    %238 = vector.extract_strided_slice %236 {offsets = [0, 0], sizes = [1, 32], strides = [1, 1]} : vector<1x128xf32> to vector<1x32xf32>
    %239 = vector.extract_strided_slice %236 {offsets = [0, 32], sizes = [1, 32], strides = [1, 1]} : vector<1x128xf32> to vector<1x32xf32>
    %240 = vector.extract_strided_slice %237 {offsets = [0, 64], sizes = [1, 32], strides = [1, 1]} : vector<1x128xf32> to vector<1x32xf32>
    %241 = vector.extract_strided_slice %236 {offsets = [0, 96], sizes = [1, 32], strides = [1, 1]} : vector<1x128xf32> to vector<1x32xf32>
    %242 = arith.mulf %239, %217 : vector<1x32xf32>
    %243 = arith.mulf %238, %240 : vector<1x32xf32>
    %244 = arith.addf %242, %243 : vector<1x32xf32>
    %245 = math.tanh %244 : vector<1x32xf32>
    %246 = arith.mulf %241, %245 : vector<1x32xf32>
    %c8_i32 = arith.constant 8 : i32
    %247 = vector.broadcast %c8_i32 : i32 to vector<9x1xi32>
    %248 = arith.cmpi eq, %10, %247 : vector<9x1xi32>
    %249 = vector.shape_cast %248 : vector<9x1xi1> to vector<9x1xi1>
    %250 = vector.broadcast %249 : vector<9x1xi1> to vector<9x32xi1>
    %251 = vector.shape_cast %246 : vector<1x32xf32> to vector<1x32xf32>
    %252 = vector.broadcast %251 : vector<1x32xf32> to vector<9x32xf32>
    %253 = arith.select %250, %252, %226 : vector<9x32xi1>, vector<9x32xf32>
    %c0_45 = arith.constant 0 : index
    %c0_46 = arith.constant 0 : index
    %254 = vector.load %arg1[%c0_45, %c0_46] : memref<1x60xf32, #tpu.memory_space<vmem>>, vector<1x60xf32>
    %c0_47 = arith.constant 0 : index
    %c0_48 = arith.constant 0 : index
    %255 = vector.load %arg5[%c0_47, %c0_48] : memref<60x128xf32, #tpu.memory_space<vmem>>, vector<60x128xf32>
    %cst_49 = arith.constant dense<0.000000e+00> : vector<1x128xf32>
    %256 = tpu.matmul %254, %255, %cst_49 {dimension_numbers = #tpu.dot_dimension_numbers<[1], [0], [0], [1], [0, 0, 1, 1], [], []>} : vector<1x60xf32>, vector<60x128xf32>, vector<1x128xf32> -> vector<1x128xf32>
    %257 = arith.truncf %246 : vector<1x32xf32> to vector<1x32xbf16>
    %c0_50 = arith.constant 0 : index
    %c0_51 = arith.constant 0 : index
    %258 = vector.load %arg7[%c0_50, %c0_51] : memref<32x128xbf16, #tpu.memory_space<vmem>>, vector<32x128xbf16>
    %cst_52 = arith.constant dense<0.000000e+00> : vector<1x128xf32>
    %259 = tpu.matmul %257, %258, %cst_52 {dimension_numbers = #tpu.dot_dimension_numbers<[1], [0], [0], [1], [0, 0, 1, 1], [], []>} : vector<1x32xbf16>, vector<32x128xbf16>, vector<1x128xf32> -> vector<1x128xf32>
    %260 = arith.addf %256, %259 : vector<1x128xf32>
    %c0_53 = arith.constant 0 : index
    %c0_54 = arith.constant 0 : index
    %261 = vector.load %arg6[%c0_53, %c0_54] : memref<1x128xf32, #tpu.memory_space<vmem>>, vector<1x128xf32>
    %262 = arith.addf %260, %261 : vector<1x128xf32>
    %263 = arith.negf %262 : vector<1x128xf32>
    %264 = math.exp %263 : vector<1x128xf32>
    %cst_55 = arith.constant 1.000000e+00 : f32
    %265 = vector.broadcast %cst_55 : f32 to vector<1x128xf32>
    %266 = arith.addf %265, %264 : vector<1x128xf32>
    %267 = arith.divf %265, %266 : vector<1x128xf32>
    %268 = math.tanh %262 : vector<1x128xf32>
    %269 = vector.extract_strided_slice %267 {offsets = [0, 0], sizes = [1, 32], strides = [1, 1]} : vector<1x128xf32> to vector<1x32xf32>
    %270 = vector.extract_strided_slice %267 {offsets = [0, 32], sizes = [1, 32], strides = [1, 1]} : vector<1x128xf32> to vector<1x32xf32>
    %271 = vector.extract_strided_slice %268 {offsets = [0, 64], sizes = [1, 32], strides = [1, 1]} : vector<1x128xf32> to vector<1x32xf32>
    %272 = vector.extract_strided_slice %267 {offsets = [0, 96], sizes = [1, 32], strides = [1, 1]} : vector<1x128xf32> to vector<1x32xf32>
    %273 = arith.mulf %270, %244 : vector<1x32xf32>
    %274 = arith.mulf %269, %271 : vector<1x32xf32>
    %275 = arith.addf %273, %274 : vector<1x32xf32>
    %276 = math.tanh %275 : vector<1x32xf32>
    %277 = arith.mulf %272, %276 : vector<1x32xf32>
    %c0_56 = arith.constant 0 : index
    %c0_57 = arith.constant 0 : index
    %278 = vector.load %arg12[%c0_56, %c0_57] : memref<1x32xf32, #tpu.memory_space<vmem>>, vector<1x32xf32>
    tpu.vector_store %arg12[%c0_56, %c0_57], %277 {strides = array<i32>} : memref<1x32xf32, #tpu.memory_space<vmem>>, vector<1x32xf32>,
    %c0_58 = arith.constant 0 : index
    %c0_59 = arith.constant 0 : index
    %279 = vector.load %arg13[%c0_58, %c0_59] : memref<1x32xf32, #tpu.memory_space<vmem>>, vector<1x32xf32>
    tpu.vector_store %arg13[%c0_58, %c0_59], %275 {strides = array<i32>} : memref<1x32xf32, #tpu.memory_space<vmem>>, vector<1x32xf32>,
    %c0_60 = arith.constant 0 : index
    %c0_61 = arith.constant 0 : index
    %280 = vector.load %arg8[%c0_60, %c0_61] : memref<32x32xf32, #tpu.memory_space<vmem>>, vector<32x32xf32>
    %cst_62 = arith.constant dense<0.000000e+00> : vector<9x32xf32>
    %281 = tpu.matmul %253, %280, %cst_62 {dimension_numbers = #tpu.dot_dimension_numbers<[1], [0], [0], [1], [0, 0, 1, 1], [], []>} : vector<9x32xf32>, vector<32x32xf32>, vector<9x32xf32> -> vector<9x32xf32>
    %c0_63 = arith.constant 0 : index
    %c0_64 = arith.constant 0 : index
    %282 = vector.load %arg9[%c0_63, %c0_64] : memref<32x32xf32, #tpu.memory_space<vmem>>, vector<32x32xf32>
    %cst_65 = arith.constant dense<0.000000e+00> : vector<1x32xf32>
    %283 = tpu.matmul %277, %282, %cst_65 {dimension_numbers = #tpu.dot_dimension_numbers<[1], [0], [0], [1], [0, 0, 1, 1], [], []>} : vector<1x32xf32>, vector<32x32xf32>, vector<1x32xf32> -> vector<1x32xf32>
    %284 = vector.broadcast %283 : vector<1x32xf32> to vector<9x32xf32>
    %285 = arith.addf %281, %284 : vector<9x32xf32>
    %286 = math.tanh %285 : vector<9x32xf32>
    %c0_66 = arith.constant 0 : index
    %c0_67 = arith.constant 0 : index
    %287 = vector.load %arg10[%c0_66, %c0_67] : memref<1x32xf32, #tpu.memory_space<vmem>>, vector<1x32xf32>
    %cst_68 = arith.constant dense<0.000000e+00> : vector<1x9xf32>
    %288 = tpu.matmul %287, %286, %cst_68 {dimension_numbers = #tpu.dot_dimension_numbers<[1], [1], [0], [0], [0, 0, 1, 0], [], []>} : vector<1x32xf32>, vector<9x32xf32>, vector<1x9xf32> -> vector<1x9xf32>
    %c0_69 = arith.constant 0 : index
    %c0_70 = arith.constant 0 : index
    %289 = vector.load %arg11[%c0_69, %c0_70] : memref<1x9xf32, #tpu.memory_space<vmem>>, vector<1x9xf32>
    tpu.vector_store %arg11[%c0_69, %c0_70], %288 {strides = array<i32>} : memref<1x9xf32, #tpu.memory_space<vmem>>, vector<1x9xf32>,
    return
  }
}

</mosaic_0001>

<llo_original>
// kernel: tpu_custom_call.1
$region0: #{tpu_custom_call.1}
  #allocation0 [shape = 'u32[]', space=smem, size = 0x4, offset = 0x4, fixed_abs, tag = 'smem constant byte address 0x4 - core index']
  #allocation1 [shape = 'u32[144,128]{1,0:T(1,128)}', space=vmem, size = 0x12000, scoped, tag = 'internal scratch']
  %s0 = inlined_call_operand.vmem [shape: f32[1,9,61], index: 0, kind: input, shape index: {}]
  %s1 = inlined_call_operand.vmem [shape: f32[1,60], index: 1, kind: input, shape index: {}]
  %s2 = inlined_call_operand.hbm [shape: f32[61,128], index: 2, kind: input, shape index: {}]
  %s3 = inlined_call_operand.vmem [shape: f32[1,128], index: 3, kind: input, shape index: {}]
  %s4 = inlined_call_operand.vmem [shape: bf16[32,128], index: 4, kind: input, shape index: {}]
  %s5 = inlined_call_operand.hbm [shape: f32[60,128], index: 5, kind: input, shape index: {}]
  %s6 = inlined_call_operand.vmem [shape: f32[1,128], index: 6, kind: input, shape index: {}]
  %s7 = inlined_call_operand.hbm [shape: bf16[32,128], index: 7, kind: input, shape index: {}]
  %s8 = inlined_call_operand.vmem [shape: f32[32,32], index: 8, kind: input, shape index: {}]
  %s9 = inlined_call_operand.hbm [shape: f32[32,32], index: 9, kind: input, shape index: {}]
  %s10 = inlined_call_operand.vmem [shape: f32[1,32], index: 10, kind: input, shape index: {}]
  %s11 = inlined_call_operand.hbm [shape: f32[1,9], index: 11, kind: output, shape index: {0}]
  %s12 = inlined_call_operand.hbm [shape: f32[1,32], index: 12, kind: output, shape index: {1}]
  %s13 = inlined_call_operand.hbm [shape: f32[1,32], index: 13, kind: output, shape index: {2}]
  %14 = xla_tuple %s11, %s12, %s13
  %s15 = sld [smem:[#allocation0]]
  $region86: #{tpu_custom_call.1} parent=0
    _
  %s17 = ssub.s32 1, %s15
  %s18 = scalar_select 0, %s17, %s15
  $region1: #{tpu_custom_call.1} parent=0
    #allocation2 [shape = 'u8[32768]{0}', space=vmem, size = 0x8000, scoped, tag = 'input window, operand 2, single buffered']
    #allocation3 [shape = 's32[1]{0}', space=sflag, size = 0x4, scoped, tag = 'scoped memory for tpu_custom_call.1']
    #allocation4 [shape = 's32[1]{0}', space=sflag, size = 0x4, scoped, tag = 'scoped memory for tpu_custom_call.1']
    #allocation5 [shape = 'u8[32768]{0}', space=vmem, size = 0x8000, scoped, tag = 'input window, operand 5, single buffered']
    #allocation6 [shape = 's32[1]{0}', space=sflag, size = 0x4, scoped, tag = 'scoped memory for tpu_custom_call.1']
    #allocation7 [shape = 'u8[8192]{0}', space=vmem, size = 0x2000, scoped, tag = 'input window, operand 7, single buffered']
    #allocation8 [shape = 'u8[16384]{0}', space=vmem, size = 0x4000, scoped, tag = 'input window, operand 9, single buffered']
    #allocation9 [shape = 's32[1]{0}', space=sflag, size = 0x4, scoped, tag = 'scoped memory for tpu_custom_call.1']
    #allocation10 [shape = 'u8[512]{0}', space=vmem, size = 0x400, scoped, tag = 'output window, operand 0, single buffered']
    #allocation11 [shape = 'u8[512]{0}', space=vmem, size = 0x400, scoped, tag = 'output window, operand 1, single buffered']
    #allocation12 [shape = 's32[1]{0}', space=sflag, size = 0x4, scoped, tag = 'scoped memory for tpu_custom_call.1']
    #allocation13 [shape = 'u8[512]{0}', space=vmem, size = 0x400, scoped, tag = 'output window, operand 2, single buffered']
    %19 = vsyncpa [#allocation3], 0
    %20 = vsyncpa [#allocation6], 0
    %21 = vsyncpa [#allocation9], 0
    %22 = vsyncpa [#allocation4], 0
    %23 = vsyncpa [#allocation12], 0
    // Predicated region
    $region2: #{tpu_custom_call.1} parent=1 // pred_check
      _
    $region3: #{tpu_custom_call.1} parent=1 // pred_check_branch
      %25 = sbr.rel (0) target = $region5
    $region4: #{tpu_custom_call.1} parent=1 // pred_region
      _
    $region5: #{tpu_custom_call.1} parent=1 // pred_fallthru
      _
    // Predicated region
    $region6: #{tpu_custom_call.1} parent=1 // pred_check
      _
    $region7: #{tpu_custom_call.1} parent=1 // pred_check_branch
      %27 = sbr.rel (0) target = $region9
    $region8: #{tpu_custom_call.1} parent=1 // pred_region
      _
    $region9: #{tpu_custom_call.1} parent=1 // pred_fallthru
      _
    // Predicated region
    $region10: #{tpu_custom_call.1} parent=1 // pred_check
      _
    $region11: #{tpu_custom_call.1} parent=1 // pred_check_branch
      %29 = sbr.rel (0) target = $region13
    $region12: #{tpu_custom_call.1} parent=1 // pred_region
      %s31 = ssub.s32 1024, 1024
      %32 = vsyncadd [#allocation3], %s31
      %s33 = sshll.u32 [#allocation2], 4
      %s34 = int_to_ptr.vmem [resolvable:$true] %s33
      %39 = dma.hbm_to_vmem [thread:$0]  %s2, 1024, %s34, [#allocation3], 128, 128, 8
    $region13: #{tpu_custom_call.1} parent=1 // pred_fallthru
      _
    // Predicated region
    $region14: #{tpu_custom_call.1} parent=1 // pred_check
      _
    $region15: #{tpu_custom_call.1} parent=1 // pred_check_branch
      %41 = sbr.rel (0) target = $region17
    $region16: #{tpu_custom_call.1} parent=1 // pred_region
      _
    $region17: #{tpu_custom_call.1} parent=1 // pred_fallthru
      _
    // Predicated region
    $region18: #{tpu_custom_call.1} parent=1 // pred_check
      _
    $region19: #{tpu_custom_call.1} parent=1 // pred_check_branch
      %43 = sbr.rel (0) target = $region21
    $region20: #{tpu_custom_call.1} parent=1 // pred_region
      _
    $region21: #{tpu_custom_call.1} parent=1 // pred_fallthru
      _
    // Predicated region
    $region22: #{tpu_custom_call.1} parent=1 // pred_check
      _
    $region23: #{tpu_custom_call.1} parent=1 // pred_check_branch
      %45 = sbr.rel (0) target = $region25
    $region24: #{tpu_custom_call.1} parent=1 // pred_region
      %s47 = ssub.s32 1024, 1024
      %48 = vsyncadd [#allocation6], %s47
      %s49 = sshll.u32 [#allocation5], 4
      %s50 = int_to_ptr.vmem [resolvable:$true] %s49
      %55 = dma.hbm_to_vmem [thread:$0]  %s5, 1024, %s50, [#allocation6], 128, 128, 8
    $region25: #{tpu_custom_call.1} parent=1 // pred_fallthru
      _
    // Predicated region
    $region26: #{tpu_custom_call.1} parent=1 // pred_check
      _
    $region27: #{tpu_custom_call.1} parent=1 // pred_check_branch
      %57 = sbr.rel (0) target = $region29
    $region28: #{tpu_custom_call.1} parent=1 // pred_region
      _
    $region29: #{tpu_custom_call.1} parent=1 // pred_fallthru
      _
    // Predicated region
    $region30: #{tpu_custom_call.1} parent=1 // pred_check
      _
    $region31: #{tpu_custom_call.1} parent=1 // pred_check_branch
      %59 = sbr.rel (0) target = $region33
    $region32: #{tpu_custom_call.1} parent=1 // pred_region
      %s61 = ssub.s32 256, 256
      %62 = vsyncadd [#allocation6], %s61
      %s63 = sshll.u32 [#allocation7], 4
      %s64 = int_to_ptr.vmem [resolvable:$true] %s63
      %69 = dma.hbm_to_vmem [thread:$0]  %s7, 256, %s64, [#allocation6], 64, 64, 4
    $region33: #{tpu_custom_call.1} parent=1 // pred_fallthru
      _
    // Predicated region
    $region34: #{tpu_custom_call.1} parent=1 // pred_check
      _
    $region35: #{tpu_custom_call.1} parent=1 // pred_check_branch
      %71 = sbr.rel (0) target = $region37
    $region36: #{tpu_custom_call.1} parent=1 // pred_region
      _
    $region37: #{tpu_custom_call.1} parent=1 // pred_fallthru
      _
    // Predicated region
    $region38: #{tpu_custom_call.1} parent=1 // pred_check
      _
    $region39: #{tpu_custom_call.1} parent=1 // pred_check_branch
      %73 = sbr.rel (0) target = $region41
    $region40: #{tpu_custom_call.1} parent=1 // pred_region
      %s75 = ssub.s32 512, 512
      %76 = vsyncadd [#allocation9], %s75
      %s77 = sshll.u32 [#allocation8], 4
      %s78 = int_to_ptr.vmem [resolvable:$true] %s77
      %83 = dma.hbm_to_vmem [thread:$0]  %s9, 512, %s78, [#allocation9], 128, 128, 8
    $region41: #{tpu_custom_call.1} parent=1 // pred_fallthru
      _
    // Predicated region
    $region42: #{tpu_custom_call.1} parent=1 // pred_check
      _
    $region43: #{tpu_custom_call.1} parent=1 // pred_check_branch
      %85 = sbr.rel (0) target = $region45
    $region44: #{tpu_custom_call.1} parent=1 // pred_region
      _
    $region45: #{tpu_custom_call.1} parent=1 // pred_fallthru
      _
    // Predicated region
    $region46: #{tpu_custom_call.1} parent=1 // pred_check
      _
    $region47: #{tpu_custom_call.1} parent=1 // pred_check_branch
      %87 = sbr.rel (0) target = $region49
    $region48: #{tpu_custom_call.1} parent=1 // pred_region
      %88 = dma.done [#allocation3], 1024
    $region49: #{tpu_custom_call.1} parent=1 // pred_fallthru
      _
    // Predicated region
    $region50: #{tpu_custom_call.1} parent=1 // pred_check
      _
    $region51: #{tpu_custom_call.1} parent=1 // pred_check_branch
      %90 = sbr.rel (0) target = $region53
    $region52: #{tpu_custom_call.1} parent=1 // pred_region
      %91 = dma.done [#allocation6], 1024
    $region53: #{tpu_custom_call.1} parent=1 // pred_fallthru
      _
    // Predicated region
    $region54: #{tpu_custom_call.1} parent=1 // pred_check
      _
    $region55: #{tpu_custom_call.1} parent=1 // pred_check_branch
      %93 = sbr.rel (0) target = $region57
    $region56: #{tpu_custom_call.1} parent=1 // pred_region
      %94 = dma.done [#allocation6], 256
    $region57: #{tpu_custom_call.1} parent=1 // pred_fallthru
      _
    // Predicated region
    $region58: #{tpu_custom_call.1} parent=1 // pred_check
      _
    $region59: #{tpu_custom_call.1} parent=1 // pred_check_branch
      %96 = sbr.rel (0) target = $region61
    $region60: #{tpu_custom_call.1} parent=1 // pred_region
      %97 = dma.done [#allocation9], 512
    $region61: #{tpu_custom_call.1} parent=1 // pred_fallthru
      _
    %v99 = vld [vmem:[%s0] sm:$0xff]
    %v100 = vld [vmem:[%s0 + $0x8] sm:$0x1]
    %v101 = vld [vmem:[#allocation2] sm:$0xff]
    %v102 = vld [vmem:[#allocation2 + $0x8] sm:$0xff]
    %v103 = vld [vmem:[#allocation2 + $0x10] sm:$0xff]
    %v104 = vld [vmem:[#allocation2 + $0x18] sm:$0xff]
    %v105 = vld [vmem:[#allocation2 + $0x20] sm:$0xff]
    %v106 = vld [vmem:[#allocation2 + $0x28] sm:$0xff]
    %v107 = vld [vmem:[#allocation2 + $0x30] sm:$0xff]
    %v108 = vld [vmem:[#allocation2 + $0x38] sm:$0x1f]
    %v109 = vld [vmem:[%s3] sm:$0x1]
    %v111 = vlaneseq
    %v112 = vshrl.u32 %v111, 7
    %v113 = vsub.s32 0, %v112
    %v114 = vrot.slane %v109, %v113
    %vm116 = vcmask 498688
    %v118 = vsel %vm116, %v99, 0
    %v121 = vsel %vm116, %v100, 0
    %vm123 = vcmask 1044480
    %v125 = vsel %vm123, %v108, 0
    %127 = vmatprep.subr.mxu0 0.0
    %128 = vmatpush1.msra.mxu0 %v101
    %129 = vmatprep.subr.mxu0 0.0
    %130 = vmatpush1.msra.mxu0 %v102
    %131 = vmatprep.subr.mxu0 0.0
    %132 = vmatpush1.msra.mxu0 %v103
    %133 = vmatprep.subr.mxu0 0.0
    %134 = vmatpush1.msra.mxu0 %v104
    %135 = vmatprep.subr.mxu0 0.0
    %136 = vmatpush1.msra.mxu0 %v105
    %137 = vmatprep.subr.mxu0 0.0
    %138 = vmatpush1.msra.mxu0 %v106
    %139 = vmatprep.subr.mxu0 0.0
    %140 = vmatpush1.msra.mxu0 %v107
    %141 = vmatprep.subr.mxu0 0.0
    %142 = vmatpush1.msra.mxu0 %v125
    %143 = vmatprep.subr.mxu0 0.0
    %144 = vmatpush1.msra.mxu0 0.0
    %145 = vmatprep.subr.mxu0 0.0
    %146 = vmatpush1.msra.mxu0 0.0
    %147 = vmatprep.subr.mxu0 0.0
    %148 = vmatpush1.msra.mxu0 0.0
    %149 = vmatprep.subr.mxu0 0.0
    %150 = vmatpush1.msra.mxu0 0.0
    %151 = vmatprep.subr.mxu0 0.0
    %152 = vmatpush1.msra.mxu0 0.0
    %153 = vmatprep.subr.mxu0 0.0
    %154 = vmatpush1.msra.mxu0 0.0
    %155 = vmatprep.subr.mxu0 0.0
    %156 = vmatpush1.msra.mxu0 0.0
    %157 = vmatprep.subr.mxu0 0.0
    %158 = vmatpush1.msra.mxu0 0.0
    %159 = vmatprep.subr.mxu0 0.0
    %160 = vmatpush1.msra.mxu0 0.0
    %161 = vmatprep.subr.mxu0 0.0
    %162 = vmatpush1.msra.mxu0 0.0
    %163 = vmatprep.subr.mxu0 0.0
    %164 = vmatpush1.msra.mxu0 0.0
    %165 = vmatprep.subr.mxu0 0.0
    %166 = vmatpush1.msra.mxu0 0.0
    %167 = vmatprep.subr.mxu0 0.0
    %168 = vmatpush1.msra.mxu0 0.0
    %169 = vmatprep.subr.mxu0 0.0
    %170 = vmatpush1.msra.mxu0 0.0
    %171 = vmatprep.subr.mxu0 0.0
    %172 = vmatpush1.msra.mxu0 0.0
    %173 = vmatprep.subr.mxu0 0.0
    %174 = vmatpush1.msra.mxu0 0.0
    %175 = vmatprep.subr.mxu0 0.0
    %176 = vmatpush1.msra.mxu0 0.0
    %177 = vmatprep.subr.mxu0 0.0
    %178 = vmatpush1.msra.mxu0 0.0
    %179 = vmatprep.subr.mxu0 0.0
    %180 = vmatpush1.msra.mxu0 0.0
    %181 = vmatprep.subr.mxu0 0.0
    %182 = vmatpush1.msra.mxu0 0.0
    %183 = vmatprep.subr.mxu0 0.0
    %184 = vmatpush1.msra.mxu0 0.0
    %185 = vmatprep.subr.mxu0 0.0
    %186 = vmatpush1.msra.mxu0 0.0
    %187 = vmatprep.subr.mxu0 0.0
    %188 = vmatpush1.msra.mxu0 0.0
    %189 = vmatprep.subr.mxu0 0.0
    %190 = vmatpush1.msra.mxu0 0.0
    %191 = vmatprep.mubr.f32.mxu0 0.0
    %192 = vmatmul.mubr.f32.gmra.mrb[0].mxu0 %v118
    %v193 = vpop.f32.mrb[0].mxu0
    %v194 = vadd.f32 %v114, %v193
    %v195 = vpop.f32.mrb[0].mxu0
    %196 = vmatprep.mubr.f32.mxu0 0.0
    %197 = vmatmul.mubr.f32.gmra.mrb[0].mxu0 %v121
    %v198 = vpop.f32.mrb[0].mxu0
    %v199 = vadd.f32 %v114, %v198
    %v200 = vpop.f32.mrb[0].mxu0
    %201 = vdwg.mxu0
    %v202 = vlaneseq
    %v203 = vshrl.u32 %v202, 7
    %v204 = vadd.s32 %v203, 8
    %v205 = vld [vmem:[%s4] sm:$0xf]
    %v206 = vld [vmem:[%s4 + $0x4] sm:$0xf]
    %v207 = vld [vmem:[%s4 + $0x8] sm:$0xf]
    %v208 = vld [vmem:[%s4 + $0xc] sm:$0xf]
    %v213 = vunpack.c.l.b16 %v205
    %v214 = vunpack.c.l.b16 %v206
    %v215 = vunpack.c.l.b16 %v207
    %v216 = vunpack.c.l.b16 %v208
    %v217 = vpack.c.b16 %v214, %v213
    %v218 = vpack.c.b16 %v216, %v215
    %vm221 = vcmask 261120
    %v223 = vsel %vm221, 0, 0
    %225 = vmatprep.subr.bf16.mxu0 0
    %226 = vmatpush1.bf16.msra.mxu0 %v217
    %227 = vmatprep.subr.bf16.mxu0 0
    %228 = vmatpush1.bf16.msra.mxu0 %v218
    %229 = vmatprep.subr.bf16.mxu0 0
    %230 = vmatpush1.bf16.msra.mxu0 0
    %231 = vmatprep.subr.bf16.mxu0 0
    %232 = vmatpush1.bf16.msra.mxu0 0
    %233 = vmatprep.subr.bf16.mxu0 0
    %234 = vmatpush1.bf16.msra.mxu0 0
    %235 = vmatprep.subr.bf16.mxu0 0
    %236 = vmatpush1.bf16.msra.mxu0 0
    %237 = vmatprep.subr.bf16.mxu0 0
    %238 = vmatpush1.bf16.msra.mxu0 0
    %239 = vmatprep.subr.bf16.mxu0 0
    %240 = vmatpush1.bf16.msra.mxu0 0
    %241 = vmatprep.subr.bf16.mxu0 0
    %242 = vmatpush1.bf16.msra.mxu0 0
    %243 = vmatprep.subr.bf16.mxu0 0
    %244 = vmatpush1.bf16.msra.mxu0 0
    %245 = vmatprep.subr.bf16.mxu0 0
    %246 = vmatpush1.bf16.msra.mxu0 0
    %247 = vmatprep.subr.bf16.mxu0 0
    %248 = vmatpush1.bf16.msra.mxu0 0
    %249 = vmatprep.subr.bf16.mxu0 0
    %250 = vmatpush1.bf16.msra.mxu0 0
    %251 = vmatprep.subr.bf16.mxu0 0
    %252 = vmatpush1.bf16.msra.mxu0 0
    %253 = vmatprep.subr.bf16.mxu0 0
    %254 = vmatpush1.bf16.msra.mxu0 0
    %255 = vmatprep.subr.bf16.mxu0 0
    %256 = vmatpush1.bf16.msra.mxu0 0
    %257 = vmatprep.mubr.bf16.mxu0 0
    %258 = vmatmul.mubr.bf16.gmra.mrb[0].mxu0 %v223
    %v259 = vpop.f32.mrb[0].mxu0
    %v260 = vadd.f32 0.0, %v259
    %v261 = vpop.f32.mrb[0].mxu0
    %v262 = vpop.f32.mrb[0].mxu0
    %v263 = vpop.f32.mrb[0].mxu0
    %264 = vdwg.mxu0
    %v265 = vadd.f32 %v194, %v260
    %v266 = vxor.u32 %v265, 2147483648
    %v267 = vmul.f32 %v266, 1.442695
    %v268 = vpow.pop %v267
    %v269 = vadd.f32 %v268, 1.0
    %v270 = vrcp.pop %v269
    %v271 = vmul.f32 1.0, %v270
    %v272 = vtanh.pop %v265
    %v273 = vmul.f32 %v271, 0.0
    %275 = vrot.lane.b32.xlu0 %v272, 64
    %v276 = vpop.permute.xlu0 %275
    %v278 = vmul.f32 %v271, %v276
    %280 = vrot.lane.b32.xlu0 %v278, 32
    %v281 = vpop.permute.xlu0 %280
    %v283 = vadd.f32 %v273, %v281
    %v284 = vtanh.pop %v283
    %286 = vrot.lane.b32.xlu0 %v284, 64
    %v287 = vpop.permute.xlu0 %286
    %v289 = vmul.f32 %v271, %v287
    %vm290 = vcmp.eq.s32.totalorder %v203, 0
    %vm291 = vcmp.eq.s32.totalorder %v204, 0
    %v292 = vsel %vm290, 1, 0
    %v293 = vsel %vm291, 1, 0
    %vm294 = vcmp.eq.s32.totalorder %v292, 1
    %vm295 = vcmp.eq.s32.totalorder %v293, 1
    %v296 = vlaneseq
    %v297 = vshrl.u32 %v296, 7
    %v298 = vsub.s32 0, %v297
    %v299 = vrot.slane %v289, %v298
    %v300 = vsel %vm294, %v299, 0.0
    %v301 = vsel %vm295, %v299, 0.0
    %v302 = vpack.c.bf16 %v289, %v289
    %304 = vrot.lane.b32.xlu0 %v302, 32
    %v305 = vpop.permute.xlu0 %304
    %v307 = vsel %vm221, %v305, 0
    %309 = vmatprep.subr.bf16.mxu0 0
    %310 = vmatpush1.bf16.msra.mxu0 %v217
    %311 = vmatprep.subr.bf16.mxu0 0
    %312 = vmatpush1.bf16.msra.mxu0 %v218
    %313 = vmatprep.subr.bf16.mxu0 0
    %314 = vmatpush1.bf16.msra.mxu0 0
    %315 = vmatprep.subr.bf16.mxu0 0
    %316 = vmatpush1.bf16.msra.mxu0 0
    %317 = vmatprep.subr.bf16.mxu0 0
    %318 = vmatpush1.bf16.msra.mxu0 0
    %319 = vmatprep.subr.bf16.mxu0 0
    %320 = vmatpush1.bf16.msra.mxu0 0
    %321 = vmatprep.subr.bf16.mxu0 0
    %322 = vmatpush1.bf16.msra.mxu0 0
    %323 = vmatprep.subr.bf16.mxu0 0
    %324 = vmatpush1.bf16.msra.mxu0 0
    %325 = vmatprep.subr.bf16.mxu0 0
    %326 = vmatpush1.bf16.msra.mxu0 0
    %327 = vmatprep.subr.bf16.mxu0 0
    %328 = vmatpush1.bf16.msra.mxu0 0
    %329 = vmatprep.subr.bf16.mxu0 0
    %330 = vmatpush1.bf16.msra.mxu0 0
    %331 = vmatprep.subr.bf16.mxu0 0
    %332 = vmatpush1.bf16.msra.mxu0 0
    %333 = vmatprep.subr.bf16.mxu0 0
    %334 = vmatpush1.bf16.msra.mxu0 0
    %335 = vmatprep.subr.bf16.mxu0 0
    %336 = vmatpush1.bf16.msra.mxu0 0
    %337 = vmatprep.subr.bf16.mxu0 0
    %338 = vmatpush1.bf16.msra.mxu0 0
    %339 = vmatprep.subr.bf16.mxu0 0
    %340 = vmatpush1.bf16.msra.mxu0 0
    %341 = vmatprep.mubr.bf16.mxu0 0
    %342 = vmatmul.mubr.bf16.gmra.mrb[0].mxu0 %v307
    %v343 = vpop.f32.mrb[0].mxu0
    %v344 = vadd.f32 0.0, %v343
    %v345 = vpop.f32.mrb[0].mxu0
    %v346 = vpop.f32.mrb[0].mxu0
    %v347 = vpop.f32.mrb[0].mxu0
    %348 = vdwg.mxu0
    %v350 = vrot.slane %v344, 7
    %v352 = vadd.f32 %v194, %v350
    %v353 = vxor.u32 %v352, 2147483648
    %v354 = vmul.f32 %v353, 1.442695
    %v355 = vpow.pop %v354
    %v356 = vadd.f32 %v355, 1.0
    %v357 = vrcp.pop %v356
    %v358 = vmul.f32 1.0, %v357
    %v359 = vtanh.pop %v352
    %v361 = vrot.slane %v283, 7
    %v363 = vmul.f32 %v358, %v361
    %365 = vrot.lane.b32.xlu0 %v359, 64
    %v366 = vpop.permute.xlu0 %365
    %v368 = vmul.f32 %v358, %v366
    %370 = vrot.lane.b32.xlu0 %v368, 32
    %v371 = vpop.permute.xlu0 %370
    %v373 = vadd.f32 %v363, %v371
    %v374 = vtanh.pop %v373
    %376 = vrot.lane.b32.xlu0 %v374, 64
    %v377 = vpop.permute.xlu0 %376
    %v379 = vmul.f32 %v358, %v377
    %vm380 = vcmp.eq.s32.totalorder %v203, 1
    %vm381 = vcmp.eq.s32.totalorder %v204, 1
    %v382 = vsel %vm380, 1, 0
    %v383 = vsel %vm381, 1, 0
    %vm384 = vcmp.eq.s32.totalorder %v382, 1
    %vm385 = vcmp.eq.s32.totalorder %v383, 1
    %v386 = vlaneseq
    %v387 = vshrl.u32 %v386, 7
    %v388 = vsub.s32 1, %v387
    %v389 = vrot.slane %v379, %v388
    %v390 = vsel %vm384, %v389, %v300
    %v391 = vsel %vm385, %v389, %v301
    %v392 = vpack.c.bf16 %v379, %v379
    %v394 = vshrl.u32 %v392, 16
    %396 = vrot.lane.b32.xlu0 %v394, 32
    %v397 = vpop.permute.xlu0 %396
    %v399 = vsel %vm221, %v397, 0
    %401 = vmatprep.subr.bf16.mxu0 0
    %402 = vmatpush1.bf16.msra.mxu0 %v217
    %403 = vmatprep.subr.bf16.mxu0 0
    %404 = vmatpush1.bf16.msra.mxu0 %v218
    %405 = vmatprep.subr.bf16.mxu0 0
    %406 = vmatpush1.bf16.msra.mxu0 0
    %407 = vmatprep.subr.bf16.mxu0 0
    %408 = vmatpush1.bf16.msra.mxu0 0
    %409 = vmatprep.subr.bf16.mxu0 0
    %410 = vmatpush1.bf16.msra.mxu0 0
    %411 = vmatprep.subr.bf16.mxu0 0
    %412 = vmatpush1.bf16.msra.mxu0 0
    %413 = vmatprep.subr.bf16.mxu0 0
    %414 = vmatpush1.bf16.msra.mxu0 0
    %415 = vmatprep.subr.bf16.mxu0 0
    %416 = vmatpush1.bf16.msra.mxu0 0
    %417 = vmatprep.subr.bf16.mxu0 0
    %418 = vmatpush1.bf16.msra.mxu0 0
    %419 = vmatprep.subr.bf16.mxu0 0
    %420 = vmatpush1.bf16.msra.mxu0 0
    %421 = vmatprep.subr.bf16.mxu0 0
    %422 = vmatpush1.bf16.msra.mxu0 0
    %423 = vmatprep.subr.bf16.mxu0 0
    %424 = vmatpush1.bf16.msra.mxu0 0
    %425 = vmatprep.subr.bf16.mxu0 0
    %426 = vmatpush1.bf16.msra.mxu0 0
    %427 = vmatprep.subr.bf16.mxu0 0
    %428 = vmatpush1.bf16.msra.mxu0 0
    %429 = vmatprep.subr.bf16.mxu0 0
    %430 = vmatpush1.bf16.msra.mxu0 0
    %431 = vmatprep.subr.bf16.mxu0 0
    %432 = vmatpush1.bf16.msra.mxu0 0
    %433 = vmatprep.mubr.bf16.mxu0 0
    %434 = vmatmul.mubr.bf16.gmra.mrb[0].mxu0 %v399
    %v435 = vpop.f32.mrb[0].mxu0
    %v436 = vadd.f32 0.0, %v435
    %v437 = vpop.f32.mrb[0].mxu0
    %v438 = vpop.f32.mrb[0].mxu0
    %v439 = vpop.f32.mrb[0].mxu0
    %440 = vdwg.mxu0
    %v442 = vrot.slane %v436, 6
    %v444 = vadd.f32 %v194, %v442
    %v445 = vxor.u32 %v444, 2147483648
    %v446 = vmul.f32 %v445, 1.442695
    %v447 = vpow.pop %v446
    %v448 = vadd.f32 %v447, 1.0
    %v449 = vrcp.pop %v448
    %v450 = vmul.f32 1.0, %v449
    %v451 = vtanh.pop %v444
    %v453 = vrot.slane %v373, 7
    %v455 = vmul.f32 %v450, %v453
    %457 = vrot.lane.b32.xlu0 %v451, 64
    %v458 = vpop.permute.xlu0 %457
    %v460 = vmul.f32 %v450, %v458
    %462 = vrot.lane.b32.xlu0 %v460, 32
    %v463 = vpop.permute.xlu0 %462
    %v465 = vadd.f32 %v455, %v463
    %v466 = vtanh.pop %v465
    %468 = vrot.lane.b32.xlu0 %v466, 64
    %v469 = vpop.permute.xlu0 %468
    %v471 = vmul.f32 %v450, %v469
    %vm472 = vcmp.eq.s32.totalorder %v203, 2
    %vm473 = vcmp.eq.s32.totalorder %v204, 2
    %v474 = vsel %vm472, 1, 0
    %v475 = vsel %vm473, 1, 0
    %vm476 = vcmp.eq.s32.totalorder %v474, 1
    %vm477 = vcmp.eq.s32.totalorder %v475, 1
    %v478 = vlaneseq
    %v479 = vshrl.u32 %v478, 7
    %v480 = vsub.s32 2, %v479
    %v481 = vrot.slane %v471, %v480
    %v482 = vsel %vm476, %v481, %v390
    %v483 = vsel %vm477, %v481, %v391
    %v484 = vpack.c.bf16 %v471, %v471
    %v486 = vrot.slane %v484, 1
    %487 = vrot.lane.b32.xlu0 %v486, 32
    %v488 = vpop.permute.xlu0 %487
    %v490 = vsel %vm221, %v488, 0
    %492 = vmatprep.subr.bf16.mxu0 0
    %493 = vmatpush1.bf16.msra.mxu0 %v217
    %494 = vmatprep.subr.bf16.mxu0 0
    %495 = vmatpush1.bf16.msra.mxu0 %v218
    %496 = vmatprep.subr.bf16.mxu0 0
    %497 = vmatpush1.bf16.msra.mxu0 0
    %498 = vmatprep.subr.bf16.mxu0 0
    %499 = vmatpush1.bf16.msra.mxu0 0
    %500 = vmatprep.subr.bf16.mxu0 0
    %501 = vmatpush1.bf16.msra.mxu0 0
    %502 = vmatprep.subr.bf16.mxu0 0
    %503 = vmatpush1.bf16.msra.mxu0 0
    %504 = vmatprep.subr.bf16.mxu0 0
    %505 = vmatpush1.bf16.msra.mxu0 0
    %506 = vmatprep.subr.bf16.mxu0 0
    %507 = vmatpush1.bf16.msra.mxu0 0
    %508 = vmatprep.subr.bf16.mxu0 0
    %509 = vmatpush1.bf16.msra.mxu0 0
    %510 = vmatprep.subr.bf16.mxu0 0
    %511 = vmatpush1.bf16.msra.mxu0 0
    %512 = vmatprep.subr.bf16.mxu0 0
    %513 = vmatpush1.bf16.msra.mxu0 0
    %514 = vmatprep.subr.bf16.mxu0 0
    %515 = vmatpush1.bf16.msra.mxu0 0
    %516 = vmatprep.subr.bf16.mxu0 0
    %517 = vmatpush1.bf16.msra.mxu0 0
    %518 = vmatprep.subr.bf16.mxu0 0
    %519 = vmatpush1.bf16.msra.mxu0 0
    %520 = vmatprep.subr.bf16.mxu0 0
    %521 = vmatpush1.bf16.msra.mxu0 0
    %522 = vmatprep.subr.bf16.mxu0 0
    %523 = vmatpush1.bf16.msra.mxu0 0
    %524 = vmatprep.mubr.bf16.mxu0 0
    %525 = vmatmul.mubr.bf16.gmra.mrb[0].mxu0 %v490
    %v526 = vpop.f32.mrb[0].mxu0
    %v527 = vadd.f32 0.0, %v526
    %v528 = vpop.f32.mrb[0].mxu0
    %v529 = vpop.f32.mrb[0].mxu0
    %v530 = vpop.f32.mrb[0].mxu0
    %531 = vdwg.mxu0
    %v533 = vrot.slane %v527, 5
    %v535 = vadd.f32 %v194, %v533
    %v536 = vxor.u32 %v535, 2147483648
    %v537 = vmul.f32 %v536, 1.442695
    %v538 = vpow.pop %v537
    %v539 = vadd.f32 %v538, 1.0
    %v540 = vrcp.pop %v539
    %v541 = vmul.f32 1.0, %v540
    %v542 = vtanh.pop %v535
    %v544 = vrot.slane %v465, 7
    %v546 = vmul.f32 %v541, %v544
    %548 = vrot.lane.b32.xlu0 %v542, 64
    %v549 = vpop.permute.xlu0 %548
    %v551 = vmul.f32 %v541, %v549
    %553 = vrot.lane.b32.xlu0 %v551, 32
    %v554 = vpop.permute.xlu0 %553
    %v556 = vadd.f32 %v546, %v554
    %v557 = vtanh.pop %v556
    %559 = vrot.lane.b32.xlu0 %v557, 64
    %v560 = vpop.permute.xlu0 %559
    %v562 = vmul.f32 %v541, %v560
    %vm563 = vcmp.eq.s32.totalorder %v203, 3
    %vm564 = vcmp.eq.s32.totalorder %v204, 3
    %v565 = vsel %vm563, 1, 0
    %v566 = vsel %vm564, 1, 0
    %vm567 = vcmp.eq.s32.totalorder %v565, 1
    %vm568 = vcmp.eq.s32.totalorder %v566, 1
    %v569 = vlaneseq
    %v570 = vshrl.u32 %v569, 7
    %v571 = vsub.s32 3, %v570
    %v572 = vrot.slane %v562, %v571
    %v573 = vsel %vm567, %v572, %v482
    %v574 = vsel %vm568, %v572, %v483
    %v575 = vpack.c.bf16 %v562, %v562
    %v577 = vshrl.u32 %v575, 16
    %v579 = vrot.slane %v577, 1
    %580 = vrot.lane.b32.xlu0 %v579, 32
    %v581 = vpop.permute.xlu0 %580
    %v583 = vsel %vm221, %v581, 0
    %585 = vmatprep.subr.bf16.mxu0 0
    %586 = vmatpush1.bf16.msra.mxu0 %v217
    %587 = vmatprep.subr.bf16.mxu0 0
    %588 = vmatpush1.bf16.msra.mxu0 %v218
    %589 = vmatprep.subr.bf16.mxu0 0
    %590 = vmatpush1.bf16.msra.mxu0 0
    %591 = vmatprep.subr.bf16.mxu0 0
    %592 = vmatpush1.bf16.msra.mxu0 0
    %593 = vmatprep.subr.bf16.mxu0 0
    %594 = vmatpush1.bf16.msra.mxu0 0
    %595 = vmatprep.subr.bf16.mxu0 0
    %596 = vmatpush1.bf16.msra.mxu0 0
    %597 = vmatprep.subr.bf16.mxu0 0
    %598 = vmatpush1.bf16.msra.mxu0 0
    %599 = vmatprep.subr.bf16.mxu0 0
    %600 = vmatpush1.bf16.msra.mxu0 0
    %601 = vmatprep.subr.bf16.mxu0 0
    %602 = vmatpush1.bf16.msra.mxu0 0
    %603 = vmatprep.subr.bf16.mxu0 0
    %604 = vmatpush1.bf16.msra.mxu0 0
    %605 = vmatprep.subr.bf16.mxu0 0
    %606 = vmatpush1.bf16.msra.mxu0 0
    %607 = vmatprep.subr.bf16.mxu0 0
    %608 = vmatpush1.bf16.msra.mxu0 0
    %609 = vmatprep.subr.bf16.mxu0 0
    %610 = vmatpush1.bf16.msra.mxu0 0
    %611 = vmatprep.subr.bf16.mxu0 0
    %612 = vmatpush1.bf16.msra.mxu0 0
    %613 = vmatprep.subr.bf16.mxu0 0
    %614 = vmatpush1.bf16.msra.mxu0 0
    %615 = vmatprep.subr.bf16.mxu0 0
    %616 = vmatpush1.bf16.msra.mxu0 0
    %617 = vmatprep.mubr.bf16.mxu0 0
    %618 = vmatmul.mubr.bf16.gmra.mrb[0].mxu0 %v583
    %v619 = vpop.f32.mrb[0].mxu0
    %v620 = vadd.f32 0.0, %v619
    %v621 = vpop.f32.mrb[0].mxu0
    %v622 = vpop.f32.mrb[0].mxu0
    %v623 = vpop.f32.mrb[0].mxu0
    %624 = vdwg.mxu0
    %v626 = vrot.slane %v620, 4
    %v628 = vadd.f32 %v194, %v626
    %v629 = vxor.u32 %v628, 2147483648
    %v630 = vmul.f32 %v629, 1.442695
    %v631 = vpow.pop %v630
    %v632 = vadd.f32 %v631, 1.0
    %v633 = vrcp.pop %v632
    %v634 = vmul.f32 1.0, %v633
    %v635 = vtanh.pop %v628
    %v637 = vrot.slane %v556, 7
    %v639 = vmul.f32 %v634, %v637
    %641 = vrot.lane.b32.xlu0 %v635, 64
    %v642 = vpop.permute.xlu0 %641
    %v644 = vmul.f32 %v634, %v642
    %646 = vrot.lane.b32.xlu0 %v644, 32
    %v647 = vpop.permute.xlu0 %646
    %v649 = vadd.f32 %v639, %v647
    %v650 = vtanh.pop %v649
    %652 = vrot.lane.b32.xlu0 %v650, 64
    %v653 = vpop.permute.xlu0 %652
    %v655 = vmul.f32 %v634, %v653
    %vm656 = vcmp.eq.s32.totalorder %v203, 4
    %vm657 = vcmp.eq.s32.totalorder %v204, 4
    %v658 = vsel %vm656, 1, 0
    %v659 = vsel %vm657, 1, 0
    %vm660 = vcmp.eq.s32.totalorder %v658, 1
    %vm661 = vcmp.eq.s32.totalorder %v659, 1
    %v662 = vlaneseq
    %v663 = vshrl.u32 %v662, 7
    %v664 = vsub.s32 4, %v663
    %v665 = vrot.slane %v655, %v664
    %v666 = vsel %vm660, %v665, %v573
    %v667 = vsel %vm661, %v665, %v574
    %v668 = vpack.c.bf16 %v655, %v655
    %v670 = vrot.slane %v668, 2
    %671 = vrot.lane.b32.xlu0 %v670, 32
    %v672 = vpop.permute.xlu0 %671
    %v674 = vsel %vm221, %v672, 0
    %676 = vmatprep.subr.bf16.mxu0 0
    %677 = vmatpush1.bf16.msra.mxu0 %v217
    %678 = vmatprep.subr.bf16.mxu0 0
    %679 = vmatpush1.bf16.msra.mxu0 %v218
    %680 = vmatprep.subr.bf16.mxu0 0
    %681 = vmatpush1.bf16.msra.mxu0 0
    %682 = vmatprep.subr.bf16.mxu0 0
    %683 = vmatpush1.bf16.msra.mxu0 0
    %684 = vmatprep.subr.bf16.mxu0 0
    %685 = vmatpush1.bf16.msra.mxu0 0
    %686 = vmatprep.subr.bf16.mxu0 0
    %687 = vmatpush1.bf16.msra.mxu0 0
    %688 = vmatprep.subr.bf16.mxu0 0
    %689 = vmatpush1.bf16.msra.mxu0 0
    %690 = vmatprep.subr.bf16.mxu0 0
    %691 = vmatpush1.bf16.msra.mxu0 0
    %692 = vmatprep.subr.bf16.mxu0 0
    %693 = vmatpush1.bf16.msra.mxu0 0
    %694 = vmatprep.subr.bf16.mxu0 0
    %695 = vmatpush1.bf16.msra.mxu0 0
    %696 = vmatprep.subr.bf16.mxu0 0
    %697 = vmatpush1.bf16.msra.mxu0 0
    %698 = vmatprep.subr.bf16.mxu0 0
    %699 = vmatpush1.bf16.msra.mxu0 0
    %700 = vmatprep.subr.bf16.mxu0 0
    %701 = vmatpush1.bf16.msra.mxu0 0
    %702 = vmatprep.subr.bf16.mxu0 0
    %703 = vmatpush1.bf16.msra.mxu0 0
    %704 = vmatprep.subr.bf16.mxu0 0
    %705 = vmatpush1.bf16.msra.mxu0 0
    %706 = vmatprep.subr.bf16.mxu0 0
    %707 = vmatpush1.bf16.msra.mxu0 0
    %708 = vmatprep.mubr.bf16.mxu0 0
    %709 = vmatmul.mubr.bf16.gmra.mrb[0].mxu0 %v674
    %v710 = vpop.f32.mrb[0].mxu0
    %v711 = vadd.f32 0.0, %v710
    %v712 = vpop.f32.mrb[0].mxu0
    %v713 = vpop.f32.mrb[0].mxu0
    %v714 = vpop.f32.mrb[0].mxu0
    %715 = vdwg.mxu0
    %v717 = vrot.slane %v711, 3
    %v719 = vadd.f32 %v194, %v717
    %v720 = vxor.u32 %v719, 2147483648
    %v721 = vmul.f32 %v720, 1.442695
    %v722 = vpow.pop %v721
    %v723 = vadd.f32 %v722, 1.0
    %v724 = vrcp.pop %v723
    %v725 = vmul.f32 1.0, %v724
    %v726 = vtanh.pop %v719
    %v728 = vrot.slane %v649, 7
    %v730 = vmul.f32 %v725, %v728
    %732 = vrot.lane.b32.xlu0 %v726, 64
    %v733 = vpop.permute.xlu0 %732
    %v735 = vmul.f32 %v725, %v733
    %737 = vrot.lane.b32.xlu0 %v735, 32
    %v738 = vpop.permute.xlu0 %737
    %v740 = vadd.f32 %v730, %v738
    %v741 = vtanh.pop %v740
    %743 = vrot.lane.b32.xlu0 %v741, 64
    %v744 = vpop.permute.xlu0 %743
    %v746 = vmul.f32 %v725, %v744
    %vm747 = vcmp.eq.s32.totalorder %v203, 5
    %vm748 = vcmp.eq.s32.totalorder %v204, 5
    %v749 = vsel %vm747, 1, 0
    %v750 = vsel %vm748, 1, 0
    %vm751 = vcmp.eq.s32.totalorder %v749, 1
    %vm752 = vcmp.eq.s32.totalorder %v750, 1
    %v753 = vlaneseq
    %v754 = vshrl.u32 %v753, 7
    %v755 = vsub.s32 5, %v754
    %v756 = vrot.slane %v746, %v755
    %v757 = vsel %vm751, %v756, %v666
    %v758 = vsel %vm752, %v756, %v667
    %v759 = vpack.c.bf16 %v746, %v746
    %v761 = vshrl.u32 %v759, 16
    %v763 = vrot.slane %v761, 2
    %764 = vrot.lane.b32.xlu0 %v763, 32
    %v765 = vpop.permute.xlu0 %764
    %v767 = vsel %vm221, %v765, 0
    %769 = vmatprep.subr.bf16.mxu0 0
    %770 = vmatpush1.bf16.msra.mxu0 %v217
    %771 = vmatprep.subr.bf16.mxu0 0
    %772 = vmatpush1.bf16.msra.mxu0 %v218
    %773 = vmatprep.subr.bf16.mxu0 0
    %774 = vmatpush1.bf16.msra.mxu0 0
    %775 = vmatprep.subr.bf16.mxu0 0
    %776 = vmatpush1.bf16.msra.mxu0 0
    %777 = vmatprep.subr.bf16.mxu0 0
    %778 = vmatpush1.bf16.msra.mxu0 0
    %779 = vmatprep.subr.bf16.mxu0 0
    %780 = vmatpush1.bf16.msra.mxu0 0
    %781 = vmatprep.subr.bf16.mxu0 0
    %782 = vmatpush1.bf16.msra.mxu0 0
    %783 = vmatprep.subr.bf16.mxu0 0
    %784 = vmatpush1.bf16.msra.mxu0 0
    %785 = vmatprep.subr.bf16.mxu0 0
    %786 = vmatpush1.bf16.msra.mxu0 0
    %787 = vmatprep.subr.bf16.mxu0 0
    %788 = vmatpush1.bf16.msra.mxu0 0
    %789 = vmatprep.subr.bf16.mxu0 0
    %790 = vmatpush1.bf16.msra.mxu0 0
    %791 = vmatprep.subr.bf16.mxu0 0
    %792 = vmatpush1.bf16.msra.mxu0 0
    %793 = vmatprep.subr.bf16.mxu0 0
    %794 = vmatpush1.bf16.msra.mxu0 0
    %795 = vmatprep.subr.bf16.mxu0 0
    %796 = vmatpush1.bf16.msra.mxu0 0
    %797 = vmatprep.subr.bf16.mxu0 0
    %798 = vmatpush1.bf16.msra.mxu0 0
    %799 = vmatprep.subr.bf16.mxu0 0
    %800 = vmatpush1.bf16.msra.mxu0 0
    %801 = vmatprep.mubr.bf16.mxu0 0
    %802 = vmatmul.mubr.bf16.gmra.mrb[0].mxu0 %v767
    %v803 = vpop.f32.mrb[0].mxu0
    %v804 = vadd.f32 0.0, %v803
    %v805 = vpop.f32.mrb[0].mxu0
    %v806 = vpop.f32.mrb[0].mxu0
    %v807 = vpop.f32.mrb[0].mxu0
    %808 = vdwg.mxu0
    %v810 = vrot.slane %v804, 2
    %v812 = vadd.f32 %v194, %v810
    %v813 = vxor.u32 %v812, 2147483648
    %v814 = vmul.f32 %v813, 1.442695
    %v815 = vpow.pop %v814
    %v816 = vadd.f32 %v815, 1.0
    %v817 = vrcp.pop %v816
    %v818 = vmul.f32 1.0, %v817
    %v819 = vtanh.pop %v812
    %v821 = vrot.slane %v740, 7
    %v823 = vmul.f32 %v818, %v821
    %825 = vrot.lane.b32.xlu0 %v819, 64
    %v826 = vpop.permute.xlu0 %825
    %v828 = vmul.f32 %v818, %v826
    %830 = vrot.lane.b32.xlu0 %v828, 32
    %v831 = vpop.permute.xlu0 %830
    %v833 = vadd.f32 %v823, %v831
    %v834 = vtanh.pop %v833
    %836 = vrot.lane.b32.xlu0 %v834, 64
    %v837 = vpop.permute.xlu0 %836
    %v839 = vmul.f32 %v818, %v837
    %vm840 = vcmp.eq.s32.totalorder %v203, 6
    %vm841 = vcmp.eq.s32.totalorder %v204, 6
    %v842 = vsel %vm840, 1, 0
    %v843 = vsel %vm841, 1, 0
    %vm844 = vcmp.eq.s32.totalorder %v842, 1
    %vm845 = vcmp.eq.s32.totalorder %v843, 1
    %v846 = vlaneseq
    %v847 = vshrl.u32 %v846, 7
    %v848 = vsub.s32 6, %v847
    %v849 = vrot.slane %v839, %v848
    %v850 = vsel %vm844, %v849, %v757
    %v851 = vsel %vm845, %v849, %v758
    %v852 = vpack.c.bf16 %v839, %v839
    %v854 = vrot.slane %v852, 3
    %855 = vrot.lane.b32.xlu0 %v854, 32
    %v856 = vpop.permute.xlu0 %855
    %v858 = vsel %vm221, %v856, 0
    %860 = vmatprep.subr.bf16.mxu0 0
    %861 = vmatpush1.bf16.msra.mxu0 %v217
    %862 = vmatprep.subr.bf16.mxu0 0
    %863 = vmatpush1.bf16.msra.mxu0 %v218
    %864 = vmatprep.subr.bf16.mxu0 0
    %865 = vmatpush1.bf16.msra.mxu0 0
    %866 = vmatprep.subr.bf16.mxu0 0
    %867 = vmatpush1.bf16.msra.mxu0 0
    %868 = vmatprep.subr.bf16.mxu0 0
    %869 = vmatpush1.bf16.msra.mxu0 0
    %870 = vmatprep.subr.bf16.mxu0 0
    %871 = vmatpush1.bf16.msra.mxu0 0
    %872 = vmatprep.subr.bf16.mxu0 0
    %873 = vmatpush1.bf16.msra.mxu0 0
    %874 = vmatprep.subr.bf16.mxu0 0
    %875 = vmatpush1.bf16.msra.mxu0 0
    %876 = vmatprep.subr.bf16.mxu0 0
    %877 = vmatpush1.bf16.msra.mxu0 0
    %878 = vmatprep.subr.bf16.mxu0 0
    %879 = vmatpush1.bf16.msra.mxu0 0
    %880 = vmatprep.subr.bf16.mxu0 0
    %881 = vmatpush1.bf16.msra.mxu0 0
    %882 = vmatprep.subr.bf16.mxu0 0
    %883 = vmatpush1.bf16.msra.mxu0 0
    %884 = vmatprep.subr.bf16.mxu0 0
    %885 = vmatpush1.bf16.msra.mxu0 0
    %886 = vmatprep.subr.bf16.mxu0 0
    %887 = vmatpush1.bf16.msra.mxu0 0
    %888 = vmatprep.subr.bf16.mxu0 0
    %889 = vmatpush1.bf16.msra.mxu0 0
    %890 = vmatprep.subr.bf16.mxu0 0
    %891 = vmatpush1.bf16.msra.mxu0 0
    %892 = vmatprep.mubr.bf16.mxu0 0
    %893 = vmatmul.mubr.bf16.gmra.mrb[0].mxu0 %v858
    %v894 = vpop.f32.mrb[0].mxu0
    %v895 = vadd.f32 0.0, %v894
    %v896 = vpop.f32.mrb[0].mxu0
    %v897 = vpop.f32.mrb[0].mxu0
    %v898 = vpop.f32.mrb[0].mxu0
    %899 = vdwg.mxu0
    %v901 = vrot.slane %v895, 1
    %v903 = vadd.f32 %v194, %v901
    %v904 = vxor.u32 %v903, 2147483648
    %v905 = vmul.f32 %v904, 1.442695
    %v906 = vpow.pop %v905
    %v907 = vadd.f32 %v906, 1.0
    %v908 = vrcp.pop %v907
    %v909 = vmul.f32 1.0, %v908
    %v910 = vtanh.pop %v903
    %v912 = vrot.slane %v833, 7
    %v914 = vmul.f32 %v909, %v912
    %916 = vrot.lane.b32.xlu0 %v910, 64
    %v917 = vpop.permute.xlu0 %916
    %v919 = vmul.f32 %v909, %v917
    %921 = vrot.lane.b32.xlu0 %v919, 32
    %v922 = vpop.permute.xlu0 %921
    %v924 = vadd.f32 %v914, %v922
    %v925 = vtanh.pop %v924
    %927 = vrot.lane.b32.xlu0 %v925, 64
    %v928 = vpop.permute.xlu0 %927
    %v930 = vmul.f32 %v909, %v928
    %vm931 = vcmp.eq.s32.totalorder %v203, 7
    %vm932 = vcmp.eq.s32.totalorder %v204, 7
    %v933 = vsel %vm931, 1, 0
    %v934 = vsel %vm932, 1, 0
    %vm935 = vcmp.eq.s32.totalorder %v933, 1
    %vm936 = vcmp.eq.s32.totalorder %v934, 1
    %v937 = vlaneseq
    %v938 = vshrl.u32 %v937, 7
    %v939 = vsub.s32 7, %v938
    %v940 = vrot.slane %v930, %v939
    %v941 = vsel %vm935, %v940, %v850
    %v942 = vsel %vm936, %v940, %v851
    %v943 = vpack.c.bf16 %v930, %v930
    %v945 = vshrl.u32 %v943, 16
    %v947 = vrot.slane %v945, 3
    %948 = vrot.lane.b32.xlu0 %v947, 32
    %v949 = vpop.permute.xlu0 %948
    %v951 = vsel %vm221, %v949, 0
    %953 = vmatprep.subr.bf16.mxu0 0
    %954 = vmatpush1.bf16.msra.mxu0 %v217
    %955 = vmatprep.subr.bf16.mxu0 0
    %956 = vmatpush1.bf16.msra.mxu0 %v218
    %957 = vmatprep.subr.bf16.mxu0 0
    %958 = vmatpush1.bf16.msra.mxu0 0
    %959 = vmatprep.subr.bf16.mxu0 0
    %960 = vmatpush1.bf16.msra.mxu0 0
    %961 = vmatprep.subr.bf16.mxu0 0
    %962 = vmatpush1.bf16.msra.mxu0 0
    %963 = vmatprep.subr.bf16.mxu0 0
    %964 = vmatpush1.bf16.msra.mxu0 0
    %965 = vmatprep.subr.bf16.mxu0 0
    %966 = vmatpush1.bf16.msra.mxu0 0
    %967 = vmatprep.subr.bf16.mxu0 0
    %968 = vmatpush1.bf16.msra.mxu0 0
    %969 = vmatprep.subr.bf16.mxu0 0
    %970 = vmatpush1.bf16.msra.mxu0 0
    %971 = vmatprep.subr.bf16.mxu0 0
    %972 = vmatpush1.bf16.msra.mxu0 0
    %973 = vmatprep.subr.bf16.mxu0 0
    %974 = vmatpush1.bf16.msra.mxu0 0
    %975 = vmatprep.subr.bf16.mxu0 0
    %976 = vmatpush1.bf16.msra.mxu0 0
    %977 = vmatprep.subr.bf16.mxu0 0
    %978 = vmatpush1.bf16.msra.mxu0 0
    %979 = vmatprep.subr.bf16.mxu0 0
    %980 = vmatpush1.bf16.msra.mxu0 0
    %981 = vmatprep.subr.bf16.mxu0 0
    %982 = vmatpush1.bf16.msra.mxu0 0
    %983 = vmatprep.subr.bf16.mxu0 0
    %984 = vmatpush1.bf16.msra.mxu0 0
    %985 = vmatprep.mubr.bf16.mxu0 0
    %986 = vmatmul.mubr.bf16.gmra.mrb[0].mxu0 %v951
    %v987 = vpop.f32.mrb[0].mxu0
    %v988 = vadd.f32 0.0, %v987
    %v989 = vpop.f32.mrb[0].mxu0
    %v990 = vpop.f32.mrb[0].mxu0
    %v991 = vpop.f32.mrb[0].mxu0
    %992 = vdwg.mxu0
    %v993 = vadd.f32 %v199, %v988
    %v994 = vxor.u32 %v993, 2147483648
    %v995 = vmul.f32 %v994, 1.442695
    %v996 = vpow.pop %v995
    %v997 = vadd.f32 %v996, 1.0
    %v998 = vrcp.pop %v997
    %v999 = vmul.f32 1.0, %v998
    %v1000 = vtanh.pop %v993
    %v1002 = vrot.slane %v924, 7
    %v1004 = vmul.f32 %v999, %v1002
    %1006 = vrot.lane.b32.xlu0 %v1000, 64
    %v1007 = vpop.permute.xlu0 %1006
    %v1009 = vmul.f32 %v999, %v1007
    %1011 = vrot.lane.b32.xlu0 %v1009, 32
    %v1012 = vpop.permute.xlu0 %1011
    %v1014 = vadd.f32 %v1004, %v1012
    %v1015 = vtanh.pop %v1014
    %1017 = vrot.lane.b32.xlu0 %v1015, 64
    %v1018 = vpop.permute.xlu0 %1017
    %v1020 = vmul.f32 %v999, %v1018
    %vm1021 = vcmp.eq.s32.totalorder %v203, 8
    %vm1022 = vcmp.eq.s32.totalorder %v204, 8
    %v1023 = vsel %vm1021, 1, 0
    %v1024 = vsel %vm1022, 1, 0
    %vm1025 = vcmp.eq.s32.totalorder %v1023, 1
    %vm1026 = vcmp.eq.s32.totalorder %v1024, 1
    %v1027 = vlaneseq
    %v1028 = vshrl.u32 %v1027, 7
    %v1029 = vsub.s32 0, %v1028
    %v1030 = vrot.slane %v1020, %v1029
    %v1031 = vsel %vm1025, %v1030, %v941
    %v1032 = vsel %vm1026, %v1030, %v942
    %v1033 = vld [vmem:[%s1] sm:$0x1]
    %v1034 = vld [vmem:[#allocation5] sm:$0xff]
    %v1035 = vld [vmem:[#allocation5 + $0x8] sm:$0xff]
    %v1036 = vld [vmem:[#allocation5 + $0x10] sm:$0xff]
    %v1037 = vld [vmem:[#allocation5 + $0x18] sm:$0xff]
    %v1038 = vld [vmem:[#allocation5 + $0x20] sm:$0xff]
    %v1039 = vld [vmem:[#allocation5 + $0x28] sm:$0xff]
    %v1040 = vld [vmem:[#allocation5 + $0x30] sm:$0xff]
    %v1041 = vld [vmem:[#allocation5 + $0x38] sm:$0xf]
    %v1042 = vpack.c.bf16 %v1020, %v1020
    %v1043 = vld [vmem:[#allocation7] sm:$0xf]
    %v1044 = vld [vmem:[#allocation7 + $0x4] sm:$0xf]
    %v1045 = vld [vmem:[#allocation7 + $0x8] sm:$0xf]
    %v1046 = vld [vmem:[#allocation7 + $0xc] sm:$0xf]
    %1048 = vrot.lane.b32.xlu0 %v1042, 32
    %v1049 = vpop.permute.xlu0 %1048
    %v1054 = vunpack.c.l.b16 %v1043
    %v1055 = vunpack.c.l.b16 %v1044
    %v1056 = vunpack.c.l.b16 %v1045
    %v1057 = vunpack.c.l.b16 %v1046
    %v1058 = vpack.c.b16 %v1055, %v1054
    %v1059 = vpack.c.b16 %v1057, %v1056
    %v1063 = vsel %vm221, %v1049, 0
    %1065 = vmatprep.subr.bf16.mxu0 0
    %1066 = vmatpush1.bf16.msra.mxu0 %v1058
    %1067 = vmatprep.subr.bf16.mxu0 0
    %1068 = vmatpush1.bf16.msra.mxu0 %v1059
    %1069 = vmatprep.subr.bf16.mxu0 0
    %1070 = vmatpush1.bf16.msra.mxu0 0
    %1071 = vmatprep.subr.bf16.mxu0 0
    %1072 = vmatpush1.bf16.msra.mxu0 0
    %1073 = vmatprep.subr.bf16.mxu0 0
    %1074 = vmatpush1.bf16.msra.mxu0 0
    %1075 = vmatprep.subr.bf16.mxu0 0
    %1076 = vmatpush1.bf16.msra.mxu0 0
    %1077 = vmatprep.subr.bf16.mxu0 0
    %1078 = vmatpush1.bf16.msra.mxu0 0
    %1079 = vmatprep.subr.bf16.mxu0 0
    %1080 = vmatpush1.bf16.msra.mxu0 0
    %1081 = vmatprep.subr.bf16.mxu0 0
    %1082 = vmatpush1.bf16.msra.mxu0 0
    %1083 = vmatprep.subr.bf16.mxu0 0
    %1084 = vmatpush1.bf16.msra.mxu0 0
    %1085 = vmatprep.subr.bf16.mxu0 0
    %1086 = vmatpush1.bf16.msra.mxu0 0
    %1087 = vmatprep.subr.bf16.mxu0 0
    %1088 = vmatpush1.bf16.msra.mxu0 0
    %1089 = vmatprep.subr.bf16.mxu0 0
    %1090 = vmatpush1.bf16.msra.mxu0 0
    %1091 = vmatprep.subr.bf16.mxu0 0
    %1092 = vmatpush1.bf16.msra.mxu0 0
    %1093 = vmatprep.subr.bf16.mxu0 0
    %1094 = vmatpush1.bf16.msra.mxu0 0
    %1095 = vmatprep.subr.bf16.mxu0 0
    %1096 = vmatpush1.bf16.msra.mxu0 0
    %1097 = vmatprep.mubr.bf16.mxu0 0
    %1098 = vmatmul.mubr.bf16.gmra.mrb[0].mxu0 %v1063
    %v1099 = vpop.f32.mrb[0].mxu0
    %v1100 = vadd.f32 0.0, %v1099
    %v1101 = vpop.f32.mrb[0].mxu0
    %v1102 = vpop.f32.mrb[0].mxu0
    %v1103 = vpop.f32.mrb[0].mxu0
    %1104 = vdwg.mxu0
    %vm1105 = vcmask 490496
    %v1107 = vsel %vm1105, %v1033, 0
    %vm1109 = vcmask 1043456
    %v1111 = vsel %vm1109, %v1041, 0
    %1113 = vmatprep.subr.mxu0 0.0
    %1114 = vmatpush1.msra.mxu0 %v1034
    %1115 = vmatprep.subr.mxu0 0.0
    %1116 = vmatpush1.msra.mxu0 %v1035
    %1117 = vmatprep.subr.mxu0 0.0
    %1118 = vmatpush1.msra.mxu0 %v1036
    %1119 = vmatprep.subr.mxu0 0.0
    %1120 = vmatpush1.msra.mxu0 %v1037
    %1121 = vmatprep.subr.mxu0 0.0
    %1122 = vmatpush1.msra.mxu0 %v1038
    %1123 = vmatprep.subr.mxu0 0.0
    %1124 = vmatpush1.msra.mxu0 %v1039
    %1125 = vmatprep.subr.mxu0 0.0
    %1126 = vmatpush1.msra.mxu0 %v1040
    %1127 = vmatprep.subr.mxu0 0.0
    %1128 = vmatpush1.msra.mxu0 %v1111
    %1129 = vmatprep.subr.mxu0 0.0
    %1130 = vmatpush1.msra.mxu0 0.0
    %1131 = vmatprep.subr.mxu0 0.0
    %1132 = vmatpush1.msra.mxu0 0.0
    %1133 = vmatprep.subr.mxu0 0.0
    %1134 = vmatpush1.msra.mxu0 0.0
    %1135 = vmatprep.subr.mxu0 0.0
    %1136 = vmatpush1.msra.mxu0 0.0
    %1137 = vmatprep.subr.mxu0 0.0
    %1138 = vmatpush1.msra.mxu0 0.0
    %1139 = vmatprep.subr.mxu0 0.0
    %1140 = vmatpush1.msra.mxu0 0.0
    %1141 = vmatprep.subr.mxu0 0.0
    %1142 = vmatpush1.msra.mxu0 0.0
    %1143 = vmatprep.subr.mxu0 0.0
    %1144 = vmatpush1.msra.mxu0 0.0
    %1145 = vmatprep.subr.mxu0 0.0
    %1146 = vmatpush1.msra.mxu0 0.0
    %1147 = vmatprep.subr.mxu0 0.0
    %1148 = vmatpush1.msra.mxu0 0.0
    %1149 = vmatprep.subr.mxu0 0.0
    %1150 = vmatpush1.msra.mxu0 0.0
    %1151 = vmatprep.subr.mxu0 0.0
    %1152 = vmatpush1.msra.mxu0 0.0
    %1153 = vmatprep.subr.mxu0 0.0
    %1154 = vmatpush1.msra.mxu0 0.0
    %1155 = vmatprep.subr.mxu0 0.0
    %1156 = vmatpush1.msra.mxu0 0.0
    %1157 = vmatprep.subr.mxu0 0.0
    %1158 = vmatpush1.msra.mxu0 0.0
    %1159 = vmatprep.subr.mxu0 0.0
    %1160 = vmatpush1.msra.mxu0 0.0
    %1161 = vmatprep.subr.mxu0 0.0
    %1162 = vmatpush1.msra.mxu0 0.0
    %1163 = vmatprep.subr.mxu0 0.0
    %1164 = vmatpush1.msra.mxu0 0.0
    %1165 = vmatprep.subr.mxu0 0.0
    %1166 = vmatpush1.msra.mxu0 0.0
    %1167 = vmatprep.subr.mxu0 0.0
    %1168 = vmatpush1.msra.mxu0 0.0
    %1169 = vmatprep.subr.mxu0 0.0
    %1170 = vmatpush1.msra.mxu0 0.0
    %1171 = vmatprep.subr.mxu0 0.0
    %1172 = vmatpush1.msra.mxu0 0.0
    %1173 = vmatprep.subr.mxu0 0.0
    %1174 = vmatpush1.msra.mxu0 0.0
    %1175 = vmatprep.subr.mxu0 0.0
    %1176 = vmatpush1.msra.mxu0 0.0
    %1177 = vmatprep.mubr.f32.mxu0 0.0
    %1178 = vmatmul.mubr.f32.gmra.mrb[0].mxu0 %v1107
    %v1179 = vpop.f32.mrb[0].mxu0
    %v1180 = vadd.f32 %v1100, %v1179
    %v1181 = vpop.f32.mrb[0].mxu0
    %1182 = vdwg.mxu0
    %v1183 = vld [vmem:[%s6] sm:$0x1]
    %v1184 = vadd.f32 %v1180, %v1183
    %v1185 = vxor.u32 %v1184, 2147483648
    %v1186 = vmul.f32 %v1185, 1.442695
    %v1187 = vpow.pop %v1186
    %v1188 = vadd.f32 %v1187, 1.0
    %v1189 = vrcp.pop %v1188
    %v1190 = vmul.f32 1.0, %v1189
    %v1191 = vtanh.pop %v1184
    %v1192 = vmul.f32 %v1190, %v1014
    %1194 = vrot.lane.b32.xlu0 %v1191, 64
    %v1195 = vpop.permute.xlu0 %1194
    %v1197 = vmul.f32 %v1190, %v1195
    %1199 = vrot.lane.b32.xlu0 %v1197, 32
    %v1200 = vpop.permute.xlu0 %1199
    %v1202 = vadd.f32 %v1192, %v1200
    %v1203 = vtanh.pop %v1202
    %1205 = vrot.lane.b32.xlu0 %v1203, 64
    %v1206 = vpop.permute.xlu0 %1205
    %v1208 = vmul.f32 %v1190, %v1206
    %1210 = vrot.lane.b32.xlu0 %v1208, 32
    %v1211 = vpop.permute.xlu0 %1210
    %vm1213 = vcmask 253952
    %1214 = vst.msk [vmem:[#allocation11] sm:$0x1] %vm1213, %v1211
    %1216 = vrot.lane.b32.xlu0 %v1202, 96
    %v1217 = vpop.permute.xlu0 %1216
    %1219 = vst.msk [vmem:[#allocation13] sm:$0x1] %vm1213, %v1217
    %v1220 = vld [vmem:[%s8] sm:$0xff]
    %v1221 = vld [vmem:[%s8 + $0x8] sm:$0xff]
    %v1222 = vld [vmem:[%s8 + $0x10] sm:$0xff]
    %v1223 = vld [vmem:[%s8 + $0x18] sm:$0xff]
    %v1224 = vld [vmem:[#allocation8] sm:$0xff]
    %v1225 = vld [vmem:[#allocation8 + $0x8] sm:$0xff]
    %v1226 = vld [vmem:[#allocation8 + $0x10] sm:$0xff]
    %v1227 = vld [vmem:[#allocation8 + $0x18] sm:$0xff]
    %v1228 = vsel %vm221, %v1211, 0
    %1230 = vmatprep.subr.mxu0 0.0
    %1231 = vmatpush1.msra.mxu0 %v1224
    %1232 = vmatprep.subr.mxu0 0.0
    %1233 = vmatpush1.msra.mxu0 %v1225
    %1234 = vmatprep.subr.mxu0 0.0
    %1235 = vmatpush1.msra.mxu0 %v1226
    %1236 = vmatprep.subr.mxu0 0.0
    %1237 = vmatpush1.msra.mxu0 %v1227
    %1238 = vmatprep.subr.mxu0 0.0
    %1239 = vmatpush1.msra.mxu0 0.0
    %1240 = vmatprep.subr.mxu0 0.0
    %1241 = vmatpush1.msra.mxu0 0.0
    %1242 = vmatprep.subr.mxu0 0.0
    %1243 = vmatpush1.msra.mxu0 0.0
    %1244 = vmatprep.subr.mxu0 0.0
    %1245 = vmatpush1.msra.mxu0 0.0
    %1246 = vmatprep.subr.mxu0 0.0
    %1247 = vmatpush1.msra.mxu0 0.0
    %1248 = vmatprep.subr.mxu0 0.0
    %1249 = vmatpush1.msra.mxu0 0.0
    %1250 = vmatprep.subr.mxu0 0.0
    %1251 = vmatpush1.msra.mxu0 0.0
    %1252 = vmatprep.subr.mxu0 0.0
    %1253 = vmatpush1.msra.mxu0 0.0
    %1254 = vmatprep.subr.mxu0 0.0
    %1255 = vmatpush1.msra.mxu0 0.0
    %1256 = vmatprep.subr.mxu0 0.0
    %1257 = vmatpush1.msra.mxu0 0.0
    %1258 = vmatprep.subr.mxu0 0.0
    %1259 = vmatpush1.msra.mxu0 0.0
    %1260 = vmatprep.subr.mxu0 0.0
    %1261 = vmatpush1.msra.mxu0 0.0
    %1262 = vmatprep.subr.mxu0 0.0
    %1263 = vmatpush1.msra.mxu0 0.0
    %1264 = vmatprep.subr.mxu0 0.0
    %1265 = vmatpush1.msra.mxu0 0.0
    %1266 = vmatprep.subr.mxu0 0.0
    %1267 = vmatpush1.msra.mxu0 0.0
    %1268 = vmatprep.subr.mxu0 0.0
    %1269 = vmatpush1.msra.mxu0 0.0
    %1270 = vmatprep.subr.mxu0 0.0
    %1271 = vmatpush1.msra.mxu0 0.0
    %1272 = vmatprep.subr.mxu0 0.0
    %1273 = vmatpush1.msra.mxu0 0.0
    %1274 = vmatprep.subr.mxu0 0.0
    %1275 = vmatpush1.msra.mxu0 0.0
    %1276 = vmatprep.subr.mxu0 0.0
    %1277 = vmatpush1.msra.mxu0 0.0
    %1278 = vmatprep.subr.mxu0 0.0
    %1279 = vmatpush1.msra.mxu0 0.0
    %1280 = vmatprep.subr.mxu0 0.0
    %1281 = vmatpush1.msra.mxu0 0.0
    %1282 = vmatprep.subr.mxu0 0.0
    %1283 = vmatpush1.msra.mxu0 0.0
    %1284 = vmatprep.subr.mxu0 0.0
    %1285 = vmatpush1.msra.mxu0 0.0
    %1286 = vmatprep.subr.mxu0 0.0
    %1287 = vmatpush1.msra.mxu0 0.0
    %1288 = vmatprep.subr.mxu0 0.0
    %1289 = vmatpush1.msra.mxu0 0.0
    %1290 = vmatprep.subr.mxu0 0.0
    %1291 = vmatpush1.msra.mxu0 0.0
    %1292 = vmatprep.subr.mxu0 0.0
    %1293 = vmatpush1.msra.mxu0 0.0
    %1294 = vmatprep.mubr.f32.mxu0 0.0
    %1295 = vmatmul.mubr.f32.gmra.mrb[0].mxu0 %v1228
    %v1296 = vpop.f32.mrb[0].mxu0
    %v1297 = vadd.f32 0.0, %v1296
    %v1298 = vpop.f32.mrb[0].mxu0
    %1299 = vdwg.mxu0
    %v1300 = vlaneseq
    %v1301 = vshrl.u32 %v1300, 7
    %v1302 = vsub.s32 0, %v1301
    %v1303 = vrot.slane %v1297, %v1302
    %1306 = vrot.lane.b32.xlu0 %v1031, 32
    %v1307 = vpop.permute.xlu0 %1306
    %1308 = vrot.lane.b32.xlu0 %v1032, 32
    %v1309 = vpop.permute.xlu0 %1308
    %v1310 = vsel %vm221, %v1307, 0
    %v1312 = vsel %vm221, %v1309, 0
    %1314 = vmatprep.subr.mxu0 0.0
    %1315 = vmatpush1.msra.mxu0 %v1220
    %1316 = vmatprep.subr.mxu0 0.0
    %1317 = vmatpush1.msra.mxu0 %v1221
    %1318 = vmatprep.subr.mxu0 0.0
    %1319 = vmatpush1.msra.mxu0 %v1222
    %1320 = vmatprep.subr.mxu0 0.0
    %1321 = vmatpush1.msra.mxu0 %v1223
    %1322 = vmatprep.subr.mxu0 0.0
    %1323 = vmatpush1.msra.mxu0 0.0
    %1324 = vmatprep.subr.mxu0 0.0
    %1325 = vmatpush1.msra.mxu0 0.0
    %1326 = vmatprep.subr.mxu0 0.0
    %1327 = vmatpush1.msra.mxu0 0.0
    %1328 = vmatprep.subr.mxu0 0.0
    %1329 = vmatpush1.msra.mxu0 0.0
    %1330 = vmatprep.subr.mxu0 0.0
    %1331 = vmatpush1.msra.mxu0 0.0
    %1332 = vmatprep.subr.mxu0 0.0
    %1333 = vmatpush1.msra.mxu0 0.0
    %1334 = vmatprep.subr.mxu0 0.0
    %1335 = vmatpush1.msra.mxu0 0.0
    %1336 = vmatprep.subr.mxu0 0.0
    %1337 = vmatpush1.msra.mxu0 0.0
    %1338 = vmatprep.subr.mxu0 0.0
    %1339 = vmatpush1.msra.mxu0 0.0
    %1340 = vmatprep.subr.mxu0 0.0
    %1341 = vmatpush1.msra.mxu0 0.0
    %1342 = vmatprep.subr.mxu0 0.0
    %1343 = vmatpush1.msra.mxu0 0.0
    %1344 = vmatprep.subr.mxu0 0.0
    %1345 = vmatpush1.msra.mxu0 0.0
    %1346 = vmatprep.subr.mxu0 0.0
    %1347 = vmatpush1.msra.mxu0 0.0
    %1348 = vmatprep.subr.mxu0 0.0
    %1349 = vmatpush1.msra.mxu0 0.0
    %1350 = vmatprep.subr.mxu0 0.0
    %1351 = vmatpush1.msra.mxu0 0.0
    %1352 = vmatprep.subr.mxu0 0.0
    %1353 = vmatpush1.msra.mxu0 0.0
    %1354 = vmatprep.subr.mxu0 0.0
    %1355 = vmatpush1.msra.mxu0 0.0
    %1356 = vmatprep.subr.mxu0 0.0
    %1357 = vmatpush1.msra.mxu0 0.0
    %1358 = vmatprep.subr.mxu0 0.0
    %1359 = vmatpush1.msra.mxu0 0.0
    %1360 = vmatprep.subr.mxu0 0.0
    %1361 = vmatpush1.msra.mxu0 0.0
    %1362 = vmatprep.subr.mxu0 0.0
    %1363 = vmatpush1.msra.mxu0 0.0
    %1364 = vmatprep.subr.mxu0 0.0
    %1365 = vmatpush1.msra.mxu0 0.0
    %1366 = vmatprep.subr.mxu0 0.0
    %1367 = vmatpush1.msra.mxu0 0.0
    %1368 = vmatprep.subr.mxu0 0.0
    %1369 = vmatpush1.msra.mxu0 0.0
    %1370 = vmatprep.subr.mxu0 0.0
    %1371 = vmatpush1.msra.mxu0 0.0
    %1372 = vmatprep.subr.mxu0 0.0
    %1373 = vmatpush1.msra.mxu0 0.0
    %1374 = vmatprep.subr.mxu0 0.0
    %1375 = vmatpush1.msra.mxu0 0.0
    %1376 = vmatprep.subr.mxu0 0.0
    %1377 = vmatpush1.msra.mxu0 0.0
    %1378 = vmatprep.mubr.f32.mxu0 0.0
    %1379 = vmatmul.mubr.f32.gmra.mrb[0].mxu0 %v1310
    %v1380 = vpop.f32.mrb[0].mxu0
    %v1381 = vadd.f32 %v1303, %v1380
    %v1382 = vpop.f32.mrb[0].mxu0
    %1383 = vmatprep.mubr.f32.mxu0 0.0
    %1384 = vmatmul.mubr.f32.gmra.mrb[0].mxu0 %v1312
    %v1385 = vpop.f32.mrb[0].mxu0
    %v1386 = vadd.f32 %v1303, %v1385
    %v1387 = vpop.f32.mrb[0].mxu0
    %1388 = vdwg.mxu0
    %v1389 = vtanh.pop %v1381
    %v1390 = vtanh.pop %v1386
    %v1391 = vld [vmem:[%s10] sm:$0x1]
    %v1393 = vsel %vm221, %v1391, 0
    %v1396 = vsel %vm221, %v1389, 0
    %v1399 = vsel %vm221, %v1390, 0
    %1401 = vmatprep.subr.mxu0 0.0
    %1402 = vmatpush1.xpose.msra.mxu0 %v1396
    %1403 = vmatprep.subr.mxu0 0.0
    %1404 = vmatpush1.xpose.msra.mxu0 %v1399
    %1405 = vmatprep.subr.mxu0 0.0
    %1406 = vmatpush1.xpose.msra.mxu0 0.0
    %1407 = vmatprep.subr.mxu0 0.0
    %1408 = vmatpush1.xpose.msra.mxu0 0.0
    %1409 = vmatprep.subr.mxu0 0.0
    %1410 = vmatpush1.xpose.msra.mxu0 0.0
    %1411 = vmatprep.subr.mxu0 0.0
    %1412 = vmatpush1.xpose.msra.mxu0 0.0
    %1413 = vmatprep.subr.mxu0 0.0
    %1414 = vmatpush1.xpose.msra.mxu0 0.0
    %1415 = vmatprep.subr.mxu0 0.0
    %1416 = vmatpush1.xpose.msra.mxu0 0.0
    %1417 = vmatprep.subr.mxu0 0.0
    %1418 = vmatpush1.xpose.msra.mxu0 0.0
    %1419 = vmatprep.subr.mxu0 0.0
    %1420 = vmatpush1.xpose.msra.mxu0 0.0
    %1421 = vmatprep.subr.mxu0 0.0
    %1422 = vmatpush1.xpose.msra.mxu0 0.0
    %1423 = vmatprep.subr.mxu0 0.0
    %1424 = vmatpush1.xpose.msra.mxu0 0.0
    %1425 = vmatprep.subr.mxu0 0.0
    %1426 = vmatpush1.xpose.msra.mxu0 0.0
    %1427 = vmatprep.subr.mxu0 0.0
    %1428 = vmatpush1.xpose.msra.mxu0 0.0
    %1429 = vmatprep.subr.mxu0 0.0
    %1430 = vmatpush1.xpose.msra.mxu0 0.0
    %1431 = vmatprep.subr.mxu0 0.0
    %1432 = vmatpush1.xpose.msra.mxu0 0.0
    %1433 = vmatprep.subr.mxu0 0.0
    %1434 = vmatpush1.xpose.msra.mxu0 0.0
    %1435 = vmatprep.subr.mxu0 0.0
    %1436 = vmatpush1.xpose.msra.mxu0 0.0
    %1437 = vmatprep.subr.mxu0 0.0
    %1438 = vmatpush1.xpose.msra.mxu0 0.0
    %1439 = vmatprep.subr.mxu0 0.0
    %1440 = vmatpush1.xpose.msra.mxu0 0.0
    %1441 = vmatprep.subr.mxu0 0.0
    %1442 = vmatpush1.xpose.msra.mxu0 0.0
    %1443 = vmatprep.subr.mxu0 0.0
    %1444 = vmatpush1.xpose.msra.mxu0 0.0
    %1445 = vmatprep.subr.mxu0 0.0
    %1446 = vmatpush1.xpose.msra.mxu0 0.0
    %1447 = vmatprep.subr.mxu0 0.0
    %1448 = vmatpush1.xpose.msra.mxu0 0.0
    %1449 = vmatprep.subr.mxu0 0.0
    %1450 = vmatpush1.xpose.msra.mxu0 0.0
    %1451 = vmatprep.subr.mxu0 0.0
    %1452 = vmatpush1.xpose.msra.mxu0 0.0
    %1453 = vmatprep.subr.mxu0 0.0
    %1454 = vmatpush1.xpose.msra.mxu0 0.0
    %1455 = vmatprep.subr.mxu0 0.0
    %1456 = vmatpush1.xpose.msra.mxu0 0.0
    %1457 = vmatprep.subr.mxu0 0.0
    %1458 = vmatpush1.xpose.msra.mxu0 0.0
    %1459 = vmatprep.subr.mxu0 0.0
    %1460 = vmatpush1.xpose.msra.mxu0 0.0
    %1461 = vmatprep.subr.mxu0 0.0
    %1462 = vmatpush1.xpose.msra.mxu0 0.0
    %1463 = vmatprep.subr.mxu0 0.0
    %1464 = vmatpush1.xpose.msra.mxu0 0.0
    %1465 = vmatprep.mubr.f32.mxu0 0.0
    %1466 = vmatmul.mubr.f32.gmra.mrb[0].mxu0 %v1393
    %v1467 = vpop.f32.mrb[0].mxu0
    %v1468 = vadd.f32 0.0, %v1467
    %v1469 = vpop.f32.mrb[0].mxu0
    %1470 = vdwg.mxu0
    %vm1471 = vcmask 65536
    %1472 = vst.msk [vmem:[#allocation10] sm:$0x1] %vm1471, %v1468
    // Predicated region
    $region62: #{tpu_custom_call.1} parent=1 // pred_check
      _
    $region63: #{tpu_custom_call.1} parent=1 // pred_check_branch
      %1474 = sbr.rel (0) target = $region65
    $region64: #{tpu_custom_call.1} parent=1 // pred_region
      %s1476 = ssub.s32 16, 16
      %1477 = vsyncadd [#allocation4], %s1476
      %s1479 = sshll.u32 [#allocation10], 4
      %s1480 = int_to_ptr.vmem [resolvable:$true] %s1479
      %1482 = dma.vmem_to_hbm [thread:$0]  %s1480, 16, %s11, [#allocation4]
    $region65: #{tpu_custom_call.1} parent=1 // pred_fallthru
      _
    // Predicated region
    $region66: #{tpu_custom_call.1} parent=1 // pred_check
      _
    $region67: #{tpu_custom_call.1} parent=1 // pred_check_branch
      %1484 = sbr.rel (0) target = $region69
    $region68: #{tpu_custom_call.1} parent=1 // pred_region
      %s1486 = ssub.s32 16, 16
      %1487 = vsyncadd [#allocation12], %s1486
      %s1489 = sshll.u32 [#allocation11], 4
      %s1490 = int_to_ptr.vmem [resolvable:$true] %s1489
      %1492 = dma.vmem_to_hbm [thread:$0]  %s1490, 16, %s12, [#allocation12]
    $region69: #{tpu_custom_call.1} parent=1 // pred_fallthru
      _
    // Predicated region
    $region70: #{tpu_custom_call.1} parent=1 // pred_check
      _
    $region71: #{tpu_custom_call.1} parent=1 // pred_check_branch
      %1494 = sbr.rel (0) target = $region73
    $region72: #{tpu_custom_call.1} parent=1 // pred_region
      %s1496 = ssub.s32 16, 16
      %1497 = vsyncadd [#allocation12], %s1496
      %s1499 = sshll.u32 [#allocation13], 4
      %s1500 = int_to_ptr.vmem [resolvable:$true] %s1499
      %1502 = dma.vmem_to_hbm [thread:$0]  %s1500, 16, %s13, [#allocation12]
    $region73: #{tpu_custom_call.1} parent=1 // pred_fallthru
      _
    // Predicated region
    $region74: #{tpu_custom_call.1} parent=1 // pred_check
      _
    $region75: #{tpu_custom_call.1} parent=1 // pred_check_branch
      %1504 = sbr.rel (0) target = $region77
    $region76: #{tpu_custom_call.1} parent=1 // pred_region
      %1505 = dma.done [#allocation4], 16
    $region77: #{tpu_custom_call.1} parent=1 // pred_fallthru
      _
    // Predicated region
    $region78: #{tpu_custom_call.1} parent=1 // pred_check
      _
    $region79: #{tpu_custom_call.1} parent=1 // pred_check_branch
      %1507 = sbr.rel (0) target = $region81
    $region80: #{tpu_custom_call.1} parent=1 // pred_region
      %1508 = dma.done [#allocation12], 16
    $region81: #{tpu_custom_call.1} parent=1 // pred_fallthru
      _
    // Predicated region
    $region82: #{tpu_custom_call.1} parent=1 // pred_check
      _
    $region83: #{tpu_custom_call.1} parent=1 // pred_check_branch
      %1510 = sbr.rel (0) target = $region85
    $region84: #{tpu_custom_call.1} parent=1 // pred_region
      %1511 = dma.done [#allocation12], 16
    $region85: #{tpu_custom_call.1} parent=1 // pred_fallthru
      _
    %1512 = vsyncpa [#allocation3], 1
    %1513 = vsyncpa [#allocation6], 1
    %1514 = vsyncpa [#allocation9], 1
    %1515 = vsyncpa [#allocation4], 1
    %1516 = vsyncpa [#allocation12], 1

</llo_original>
